<compile_context>
chip_gen: v7x
topology: tpu7x:2x2x1
jax: 0.10.0
libtpu: 0.0.40
codegen_flags: <defaults>
</compile_context>

<pallas_src>
import jax
import jax.numpy as jnp
from jax.experimental import pallas as pl
from jax.experimental.pallas import tpu as pltpu


def _round_up(n, m):
    return ((n + m - 1) // m) * m


def _cdiv(a, b):
    return -(-a // b)


def _kan_kernel(xt_ref, w1_ref, b1_ref, w2_ref, b2_ref, wsumt_ref,
                ot_ref, basis_ref):
    # xt    : (Din, TB)   input tile, batch on the 128-lane axis
    # w1/b1/w2 : (Din, H) per-feature basis-MLP params (resident)
    # b2    : (Din, 1)    output bias of each basis MLP
    # wsumt : (TO, Din)   sum-over-basis mixing weights, Dout-tiled
    # ot    : (TO, TB)    output tile (transposed)
    # basis : (Din, TB)   f32 VMEM scratch, cached across the Dout grid axis
    j = pl.program_id(1)

    # Recompute the basis activations only once per batch tile (j == 0);
    # later Dout tiles reuse the VMEM-resident scratch.
    @pl.when(j == 0)
    def _():
        xt = xt_ref[...]
        w1 = w1_ref[...]
        b1 = b1_ref[...]
        w2 = w2_ref[...]
        hidden = w1_ref.shape[1]

        # Fold the 16->1 bias in at init; accumulator stays (Din, TB) f32.
        acc = jnp.broadcast_to(b2_ref[...], xt.shape).astype(jnp.float32)

        # Statically unrolled loop over hidden channels; every op is a fully
        # lane-dense (Din, TB) VPU/EUP op, the H-reduction is accumulation.
        for k in range(hidden):
            h = xt * w1[:, k:k + 1] + b1[:, k:k + 1]          # (Din, TB)
            # SiLU = h * sigmoid(h); sigmoid(h) = 0.5*(tanh(h/2)+1): a single
            # EUP transcendental per element (exact, no inf-propagation).
            s = 0.5 * (jnp.tanh(0.5 * h) + 1.0)
            acc = acc + (h * s) * w2[:, k:k + 1]
        basis_ref[...] = acc

    # Mix basis outputs into output features on the MXU (f32 accumulation):
    # (TO, Din) @ (Din, TB) -> (TO, TB), lane-dense unmasked stores.
    ot_ref[...] = jnp.dot(
        wsumt_ref[...], basis_ref[...], preferred_element_type=jnp.float32
    ).astype(ot_ref.dtype)


def kan_layer_pallas(x, w1, b1, w2, b2, wsum, *, block_batch=512):
    """x: (B, Din); w1/b1/w2: (Din, H); b2: (1, Din); wsum: (Din, Dout)."""
    batch, din = x.shape
    dout = wsum.shape[1]
    hidden = w1.shape[1]

    # Per-generation VMEM budget (128 MiB parts get ~96 MiB, v7x gets 48 MiB).
    try:
        vmem_cap = int(pltpu.get_tpu_info().vmem_capacity_bytes)
    except Exception:
        vmem_cap = 64 * 1024 * 1024
    vmem_limit = min(vmem_cap * 3 // 4, 100 * 1024 * 1024)

    # ---- batch tiling: balanced tiles, >=2 tiles when possible (megacore) --
    n_b = max(1, _cdiv(batch, block_batch))
    if n_b == 1 and batch > 128:
        n_b = 2  # give v7x's second TensorCore work
    tb = _round_up(_cdiv(batch, n_b), 128)   # batch lives on the lane axis
    pb = n_b * tb

    # ---- Dout tiling: largest multiple of 8 that fits the VMEM budget ------
    def footprint(t_o):
        return 4 * (2 * din * tb                 # x^T tile (double-buffered)
                    + (3 * hidden + 1) * din     # resident MLP params
                    + 2 * t_o * din              # wsum^T tile (double-buffered)
                    + 2 * t_o * tb               # out^T tile (double-buffered)
                    + din * tb)                  # basis scratch

    budget = int(vmem_limit * 0.7)
    t_o = _round_up(dout, 8)
    while t_o > 8 and footprint(t_o) > budget:
        t_o = max(8, _round_up(t_o // 2, 8))
    n_o = _cdiv(dout, t_o)
    pdout = n_o * t_o

    # ---- wrapper-side layout plumbing (transposes / zero pads) -------------
    xt = jnp.pad(jnp.transpose(x), ((0, 0), (0, pb - batch)))           # (Din, PB)
    wsumt = jnp.pad(jnp.transpose(wsum), ((0, pdout - dout), (0, 0)))   # (PDout, Din)
    b2t = jnp.transpose(b2)                                             # (Din, 1)

    grid = (n_b, n_o)

    flops = pb * din * hidden * 6 + 2 * pb * din * pdout
    transcendentals = pb * din * hidden
    bytes_accessed = 4 * (pb * din + pb * pdout + (3 * hidden + 1) * din
                          + n_b * din * pdout)

    def build(single_buffer_weights):
        # Constant-index weights never get re-DMA'd; single-buffer them.
        res = ({"pipeline_mode": pl.Buffered(1)}
               if single_buffer_weights else {})
        in_specs = [
            pl.BlockSpec((din, tb), lambda b, j: (0, b)),               # x^T
            pl.BlockSpec((din, hidden), lambda b, j: (0, 0), **res),    # w1
            pl.BlockSpec((din, hidden), lambda b, j: (0, 0), **res),    # b1
            pl.BlockSpec((din, hidden), lambda b, j: (0, 0), **res),    # w2
            pl.BlockSpec((din, 1), lambda b, j: (0, 0), **res),         # b2^T
            pl.BlockSpec((t_o, din), lambda b, j: (j, 0)),              # wsum^T
        ]
        return pl.pallas_call(
            _kan_kernel,
            grid=grid,
            in_specs=in_specs,
            out_specs=pl.BlockSpec((t_o, tb), lambda b, j: (j, b)),
            out_shape=jax.ShapeDtypeStruct((pdout, pb), jnp.float32),
            scratch_shapes=[pltpu.VMEM((din, tb), jnp.float32)],
            compiler_params=pltpu.CompilerParams(
                dimension_semantics=("parallel", "arbitrary"),
                vmem_limit_bytes=vmem_limit,
            ),
            cost_estimate=pl.CostEstimate(
                flops=flops,
                transcendentals=transcendentals,
                bytes_accessed=bytes_accessed,
            ),
        )

    try:
        out_t = build(True)(xt, w1, b1, w2, b2t, wsumt)
    except Exception:
        # This JAX version rejects pl.Buffered(1); fall back to default
        # double-buffering for the (small) resident params.
        out_t = build(False)(xt, w1, b1, w2, b2t, wsumt)

    # Slice off Dout/batch padding and transpose back to (B, Dout).
    return jnp.transpose(out_t[:dout, :batch])


def kan_layer_reference(x, weights, w1, b1, w2, b2):
    """Pure-JAX mirror of the PyTorch forward (loop semantics, exact sigmoid)."""
    batch, input_dim = x.shape
    output_dim = weights.shape[0]
    outputs = []
    for o in range(output_dim):
        out = jnp.zeros((batch,), jnp.float32)
        for i in range(input_dim):
            t = x[:, i:i + 1]                                    # (B, 1)
            h = t * w1[i][None, :] + b1[i][None, :]              # (B, 16)
            h = h * jax.nn.sigmoid(h)
            phi = jnp.sum(h * w2[i][None, :], axis=-1, keepdims=True) + b2[0, i]
            w = weights[o, i]                                    # (num_basis,)
            out = out + jnp.sum(w[None, :] * phi, axis=-1)
        outputs.append(out)
    return jnp.stack(outputs, axis=1)


if __name__ == "__main__":
    # Small shapes consistent with the module (input_dim <= num_basis required
    # by the PyTorch code, which indexes basis_functions by in_dim).
    batch, input_dim, output_dim, num_basis, hidden = 8, 4, 6, 5, 16

    key = jax.random.PRNGKey(0)
    k_w, k_x, *k_basis = jax.random.split(key, 2 + 4 * num_basis)

    # nn.Parameter(torch.randn(output_dim, input_dim, num_basis))
    weights = jax.random.normal(k_w, (output_dim, input_dim, num_basis),
                                jnp.float32)

    # Deterministic init of the num_basis tiny MLPs; only first input_dim used.
    w1_all, b1_all, w2_all, b2_all = [], [], [], []
    for j in range(num_basis):
        ka, kb, kc, kd = k_basis[4 * j: 4 * j + 4]
        w1_all.append(jax.random.normal(ka, (hidden,), jnp.float32) * 0.5)
        b1_all.append(jax.random.normal(kb, (hidden,), jnp.float32) * 0.1)
        w2_all.append(jax.random.normal(kc, (hidden,), jnp.float32) * 0.5)
        b2_all.append(jax.random.normal(kd, (), jnp.float32) * 0.1)

    w1 = jnp.stack(w1_all[:input_dim], axis=0)            # (Din, 16)
    b1 = jnp.stack(b1_all[:input_dim], axis=0)            # (Din, 16)
    w2 = jnp.stack(w2_all[:input_dim], axis=0)            # (Din, 16)
    b2 = jnp.stack(b2_all[:input_dim], axis=0)[None, :]   # (1, Din)

    # Sum of per-basis weights (the only thing surviving the torch sum),
    # laid out (Din, Dout) so the kernel mixes basis^T into out^T.
    wsum = jnp.transpose(jnp.sum(weights, axis=-1), (1, 0))  # (Din, Dout)

    x = jax.random.normal(k_x, (batch, input_dim), jnp.float32)

    out = jax.block_until_ready(kan_layer_pallas(x, w1, b1, w2, b2, wsum))
    ref = jax.block_until_ready(kan_layer_reference(x, weights, w1, b1, w2, b2))

    assert out.shape == (batch, output_dim), out.shape
    # Exact sigmoid (via tanh) inside the kernel -> tight tolerance again.
    err = float(jnp.max(jnp.abs(out - ref)))
    scale = max(float(jnp.max(jnp.abs(ref))), 1.0)
    assert err <= 1e-4 * scale, (err, scale)
    print("KERNEL_OK")
</pallas_src>

<mosaic_0001>
module attributes {stable_mosaic.version = 11 : i64} {
  func.func @_kan_kernel(%arg0: i32, %arg1: i32, %arg2: memref<4x128xf32, #tpu.memory_space<vmem>>, %arg3: memref<4x16xf32, #tpu.memory_space<vmem>>, %arg4: memref<4x16xf32, #tpu.memory_space<vmem>>, %arg5: memref<4x16xf32, #tpu.memory_space<vmem>>, %arg6: memref<4x1xf32, #tpu.memory_space<vmem>>, %arg7: memref<8x4xf32, #tpu.memory_space<vmem>>, %arg8: memref<8x128xf32, #tpu.memory_space<vmem>>, %arg9: memref<4x128xf32, #tpu.memory_space<vmem>>) attributes {dimension_semantics = [#tpu.dimension_semantics<parallel>, #tpu.dimension_semantics<arbitrary>], iteration_bounds = array<i64: 1, 1>, scalar_prefetch = 0 : i64, scratch_operands = 1 : i64, tpu.core_type = #tpu.core_type<tc>, window_params = [{transform_indices = @transform_0, window_bounds = array<i64: 4, 128>}, {pipeline_mode = #tpu.pipeline_mode<synchronous>, transform_indices = @transform_1, window_bounds = array<i64: 4, 16>}, {pipeline_mode = #tpu.pipeline_mode<synchronous>, transform_indices = @transform_2, window_bounds = array<i64: 4, 16>}, {pipeline_mode = #tpu.pipeline_mode<synchronous>, transform_indices = @transform_3, window_bounds = array<i64: 4, 16>}, {pipeline_mode = #tpu.pipeline_mode<synchronous>, transform_indices = @transform_4, window_bounds = array<i64: 4, 1>}, {transform_indices = @transform_5, window_bounds = array<i64: 8, 4>}, {transform_indices = @transform_6, window_bounds = array<i64: 8, 128>}]} {
    %c0_i32 = arith.constant 0 : i32
    %0 = arith.cmpi eq, %arg1, %c0_i32 : i32
    %1 = arith.extui %0 : i1 to i32
    %c0_i32_0 = arith.constant 0 : i32
    %2 = arith.cmpi ne, %1, %c0_i32_0 : i32
    scf.if %2 {
      %c0_6 = arith.constant 0 : index
      %c0_7 = arith.constant 0 : index
      %7 = vector.load %arg2[%c0_6, %c0_7] : memref<4x128xf32, #tpu.memory_space<vmem>>, vector<4x128xf32>
      %c0_8 = arith.constant 0 : index
      %c0_9 = arith.constant 0 : index
      %8 = vector.load %arg3[%c0_8, %c0_9] : memref<4x16xf32, #tpu.memory_space<vmem>>, vector<4x16xf32>
      %c0_10 = arith.constant 0 : index
      %c0_11 = arith.constant 0 : index
      %9 = vector.load %arg4[%c0_10, %c0_11] : memref<4x16xf32, #tpu.memory_space<vmem>>, vector<4x16xf32>
      %c0_12 = arith.constant 0 : index
      %c0_13 = arith.constant 0 : index
      %10 = vector.load %arg5[%c0_12, %c0_13] : memref<4x16xf32, #tpu.memory_space<vmem>>, vector<4x16xf32>
      %c0_14 = arith.constant 0 : index
      %c0_15 = arith.constant 0 : index
      %11 = vector.load %arg6[%c0_14, %c0_15] : memref<4x1xf32, #tpu.memory_space<vmem>>, vector<4x1xf32>
      %12 = vector.shape_cast %11 : vector<4x1xf32> to vector<4x1xf32>
      %13 = vector.broadcast %12 : vector<4x1xf32> to vector<4x128xf32>
      %14 = vector.extract_strided_slice %8 {offsets = [0, 0], sizes = [4, 1], strides = [1, 1]} : vector<4x16xf32> to vector<4x1xf32>
      %15 = vector.broadcast %14 : vector<4x1xf32> to vector<4x128xf32>
      %16 = arith.mulf %7, %15 : vector<4x128xf32>
      %17 = vector.extract_strided_slice %9 {offsets = [0, 0], sizes = [4, 1], strides = [1, 1]} : vector<4x16xf32> to vector<4x1xf32>
      %18 = vector.broadcast %17 : vector<4x1xf32> to vector<4x128xf32>
      %19 = arith.addf %16, %18 : vector<4x128xf32>
      %cst_16 = arith.constant 5.000000e-01 : f32
      %20 = vector.broadcast %cst_16 : f32 to vector<4x128xf32>
      %21 = arith.mulf %20, %19 : vector<4x128xf32>
      %22 = math.tanh %21 : vector<4x128xf32>
      %cst_17 = arith.constant 1.000000e+00 : f32
      %23 = vector.broadcast %cst_17 : f32 to vector<4x128xf32>
      %24 = arith.addf %22, %23 : vector<4x128xf32>
      %cst_18 = arith.constant 5.000000e-01 : f32
      %25 = vector.broadcast %cst_18 : f32 to vector<4x128xf32>
      %26 = arith.mulf %25, %24 : vector<4x128xf32>
      %27 = arith.mulf %19, %26 : vector<4x128xf32>
      %28 = vector.extract_strided_slice %10 {offsets = [0, 0], sizes = [4, 1], strides = [1, 1]} : vector<4x16xf32> to vector<4x1xf32>
      %29 = vector.broadcast %28 : vector<4x1xf32> to vector<4x128xf32>
      %30 = arith.mulf %27, %29 : vector<4x128xf32>
      %31 = arith.addf %13, %30 : vector<4x128xf32>
      %32 = vector.extract_strided_slice %8 {offsets = [0, 1], sizes = [4, 1], strides = [1, 1]} : vector<4x16xf32> to vector<4x1xf32>
      %33 = vector.broadcast %32 : vector<4x1xf32> to vector<4x128xf32>
      %34 = arith.mulf %7, %33 : vector<4x128xf32>
      %35 = vector.extract_strided_slice %9 {offsets = [0, 1], sizes = [4, 1], strides = [1, 1]} : vector<4x16xf32> to vector<4x1xf32>
      %36 = vector.broadcast %35 : vector<4x1xf32> to vector<4x128xf32>
      %37 = arith.addf %34, %36 : vector<4x128xf32>
      %cst_19 = arith.constant 5.000000e-01 : f32
      %38 = vector.broadcast %cst_19 : f32 to vector<4x128xf32>
      %39 = arith.mulf %38, %37 : vector<4x128xf32>
      %40 = math.tanh %39 : vector<4x128xf32>
      %cst_20 = arith.constant 1.000000e+00 : f32
      %41 = vector.broadcast %cst_20 : f32 to vector<4x128xf32>
      %42 = arith.addf %40, %41 : vector<4x128xf32>
      %cst_21 = arith.constant 5.000000e-01 : f32
      %43 = vector.broadcast %cst_21 : f32 to vector<4x128xf32>
      %44 = arith.mulf %43, %42 : vector<4x128xf32>
      %45 = arith.mulf %37, %44 : vector<4x128xf32>
      %46 = vector.extract_strided_slice %10 {offsets = [0, 1], sizes = [4, 1], strides = [1, 1]} : vector<4x16xf32> to vector<4x1xf32>
      %47 = vector.broadcast %46 : vector<4x1xf32> to vector<4x128xf32>
      %48 = arith.mulf %45, %47 : vector<4x128xf32>
      %49 = arith.addf %31, %48 : vector<4x128xf32>
      %50 = vector.extract_strided_slice %8 {offsets = [0, 2], sizes = [4, 1], strides = [1, 1]} : vector<4x16xf32> to vector<4x1xf32>
      %51 = vector.broadcast %50 : vector<4x1xf32> to vector<4x128xf32>
      %52 = arith.mulf %7, %51 : vector<4x128xf32>
      %53 = vector.extract_strided_slice %9 {offsets = [0, 2], sizes = [4, 1], strides = [1, 1]} : vector<4x16xf32> to vector<4x1xf32>
      %54 = vector.broadcast %53 : vector<4x1xf32> to vector<4x128xf32>
      %55 = arith.addf %52, %54 : vector<4x128xf32>
      %cst_22 = arith.constant 5.000000e-01 : f32
      %56 = vector.broadcast %cst_22 : f32 to vector<4x128xf32>
      %57 = arith.mulf %56, %55 : vector<4x128xf32>
      %58 = math.tanh %57 : vector<4x128xf32>
      %cst_23 = arith.constant 1.000000e+00 : f32
      %59 = vector.broadcast %cst_23 : f32 to vector<4x128xf32>
      %60 = arith.addf %58, %59 : vector<4x128xf32>
      %cst_24 = arith.constant 5.000000e-01 : f32
      %61 = vector.broadcast %cst_24 : f32 to vector<4x128xf32>
      %62 = arith.mulf %61, %60 : vector<4x128xf32>
      %63 = arith.mulf %55, %62 : vector<4x128xf32>
      %64 = vector.extract_strided_slice %10 {offsets = [0, 2], sizes = [4, 1], strides = [1, 1]} : vector<4x16xf32> to vector<4x1xf32>
      %65 = vector.broadcast %64 : vector<4x1xf32> to vector<4x128xf32>
      %66 = arith.mulf %63, %65 : vector<4x128xf32>
      %67 = arith.addf %49, %66 : vector<4x128xf32>
      %68 = vector.extract_strided_slice %8 {offsets = [0, 3], sizes = [4, 1], strides = [1, 1]} : vector<4x16xf32> to vector<4x1xf32>
      %69 = vector.broadcast %68 : vector<4x1xf32> to vector<4x128xf32>
      %70 = arith.mulf %7, %69 : vector<4x128xf32>
      %71 = vector.extract_strided_slice %9 {offsets = [0, 3], sizes = [4, 1], strides = [1, 1]} : vector<4x16xf32> to vector<4x1xf32>
      %72 = vector.broadcast %71 : vector<4x1xf32> to vector<4x128xf32>
      %73 = arith.addf %70, %72 : vector<4x128xf32>
      %cst_25 = arith.constant 5.000000e-01 : f32
      %74 = vector.broadcast %cst_25 : f32 to vector<4x128xf32>
      %75 = arith.mulf %74, %73 : vector<4x128xf32>
      %76 = math.tanh %75 : vector<4x128xf32>
      %cst_26 = arith.constant 1.000000e+00 : f32
      %77 = vector.broadcast %cst_26 : f32 to vector<4x128xf32>
      %78 = arith.addf %76, %77 : vector<4x128xf32>
      %cst_27 = arith.constant 5.000000e-01 : f32
      %79 = vector.broadcast %cst_27 : f32 to vector<4x128xf32>
      %80 = arith.mulf %79, %78 : vector<4x128xf32>
      %81 = arith.mulf %73, %80 : vector<4x128xf32>
      %82 = vector.extract_strided_slice %10 {offsets = [0, 3], sizes = [4, 1], strides = [1, 1]} : vector<4x16xf32> to vector<4x1xf32>
      %83 = vector.broadcast %82 : vector<4x1xf32> to vector<4x128xf32>
      %84 = arith.mulf %81, %83 : vector<4x128xf32>
      %85 = arith.addf %67, %84 : vector<4x128xf32>
      %86 = vector.extract_strided_slice %8 {offsets = [0, 4], sizes = [4, 1], strides = [1, 1]} : vector<4x16xf32> to vector<4x1xf32>
      %87 = vector.broadcast %86 : vector<4x1xf32> to vector<4x128xf32>
      %88 = arith.mulf %7, %87 : vector<4x128xf32>
      %89 = vector.extract_strided_slice %9 {offsets = [0, 4], sizes = [4, 1], strides = [1, 1]} : vector<4x16xf32> to vector<4x1xf32>
      %90 = vector.broadcast %89 : vector<4x1xf32> to vector<4x128xf32>
      %91 = arith.addf %88, %90 : vector<4x128xf32>
      %cst_28 = arith.constant 5.000000e-01 : f32
      %92 = vector.broadcast %cst_28 : f32 to vector<4x128xf32>
      %93 = arith.mulf %92, %91 : vector<4x128xf32>
      %94 = math.tanh %93 : vector<4x128xf32>
      %cst_29 = arith.constant 1.000000e+00 : f32
      %95 = vector.broadcast %cst_29 : f32 to vector<4x128xf32>
      %96 = arith.addf %94, %95 : vector<4x128xf32>
      %cst_30 = arith.constant 5.000000e-01 : f32
      %97 = vector.broadcast %cst_30 : f32 to vector<4x128xf32>
      %98 = arith.mulf %97, %96 : vector<4x128xf32>
      %99 = arith.mulf %91, %98 : vector<4x128xf32>
      %100 = vector.extract_strided_slice %10 {offsets = [0, 4], sizes = [4, 1], strides = [1, 1]} : vector<4x16xf32> to vector<4x1xf32>
      %101 = vector.broadcast %100 : vector<4x1xf32> to vector<4x128xf32>
      %102 = arith.mulf %99, %101 : vector<4x128xf32>
      %103 = arith.addf %85, %102 : vector<4x128xf32>
      %104 = vector.extract_strided_slice %8 {offsets = [0, 5], sizes = [4, 1], strides = [1, 1]} : vector<4x16xf32> to vector<4x1xf32>
      %105 = vector.broadcast %104 : vector<4x1xf32> to vector<4x128xf32>
      %106 = arith.mulf %7, %105 : vector<4x128xf32>
      %107 = vector.extract_strided_slice %9 {offsets = [0, 5], sizes = [4, 1], strides = [1, 1]} : vector<4x16xf32> to vector<4x1xf32>
      %108 = vector.broadcast %107 : vector<4x1xf32> to vector<4x128xf32>
      %109 = arith.addf %106, %108 : vector<4x128xf32>
      %cst_31 = arith.constant 5.000000e-01 : f32
      %110 = vector.broadcast %cst_31 : f32 to vector<4x128xf32>
      %111 = arith.mulf %110, %109 : vector<4x128xf32>
      %112 = math.tanh %111 : vector<4x128xf32>
      %cst_32 = arith.constant 1.000000e+00 : f32
      %113 = vector.broadcast %cst_32 : f32 to vector<4x128xf32>
      %114 = arith.addf %112, %113 : vector<4x128xf32>
      %cst_33 = arith.constant 5.000000e-01 : f32
      %115 = vector.broadcast %cst_33 : f32 to vector<4x128xf32>
      %116 = arith.mulf %115, %114 : vector<4x128xf32>
      %117 = arith.mulf %109, %116 : vector<4x128xf32>
      %118 = vector.extract_strided_slice %10 {offsets = [0, 5], sizes = [4, 1], strides = [1, 1]} : vector<4x16xf32> to vector<4x1xf32>
      %119 = vector.broadcast %118 : vector<4x1xf32> to vector<4x128xf32>
      %120 = arith.mulf %117, %119 : vector<4x128xf32>
      %121 = arith.addf %103, %120 : vector<4x128xf32>
      %122 = vector.extract_strided_slice %8 {offsets = [0, 6], sizes = [4, 1], strides = [1, 1]} : vector<4x16xf32> to vector<4x1xf32>
      %123 = vector.broadcast %122 : vector<4x1xf32> to vector<4x128xf32>
      %124 = arith.mulf %7, %123 : vector<4x128xf32>
      %125 = vector.extract_strided_slice %9 {offsets = [0, 6], sizes = [4, 1], strides = [1, 1]} : vector<4x16xf32> to vector<4x1xf32>
      %126 = vector.broadcast %125 : vector<4x1xf32> to vector<4x128xf32>
      %127 = arith.addf %124, %126 : vector<4x128xf32>
      %cst_34 = arith.constant 5.000000e-01 : f32
      %128 = vector.broadcast %cst_34 : f32 to vector<4x128xf32>
      %129 = arith.mulf %128, %127 : vector<4x128xf32>
      %130 = math.tanh %129 : vector<4x128xf32>
      %cst_35 = arith.constant 1.000000e+00 : f32
      %131 = vector.broadcast %cst_35 : f32 to vector<4x128xf32>
      %132 = arith.addf %130, %131 : vector<4x128xf32>
      %cst_36 = arith.constant 5.000000e-01 : f32
      %133 = vector.broadcast %cst_36 : f32 to vector<4x128xf32>
      %134 = arith.mulf %133, %132 : vector<4x128xf32>
      %135 = arith.mulf %127, %134 : vector<4x128xf32>
      %136 = vector.extract_strided_slice %10 {offsets = [0, 6], sizes = [4, 1], strides = [1, 1]} : vector<4x16xf32> to vector<4x1xf32>
      %137 = vector.broadcast %136 : vector<4x1xf32> to vector<4x128xf32>
      %138 = arith.mulf %135, %137 : vector<4x128xf32>
      %139 = arith.addf %121, %138 : vector<4x128xf32>
      %140 = vector.extract_strided_slice %8 {offsets = [0, 7], sizes = [4, 1], strides = [1, 1]} : vector<4x16xf32> to vector<4x1xf32>
      %141 = vector.broadcast %140 : vector<4x1xf32> to vector<4x128xf32>
      %142 = arith.mulf %7, %141 : vector<4x128xf32>
      %143 = vector.extract_strided_slice %9 {offsets = [0, 7], sizes = [4, 1], strides = [1, 1]} : vector<4x16xf32> to vector<4x1xf32>
      %144 = vector.broadcast %143 : vector<4x1xf32> to vector<4x128xf32>
      %145 = arith.addf %142, %144 : vector<4x128xf32>
      %cst_37 = arith.constant 5.000000e-01 : f32
      %146 = vector.broadcast %cst_37 : f32 to vector<4x128xf32>
      %147 = arith.mulf %146, %145 : vector<4x128xf32>
      %148 = math.tanh %147 : vector<4x128xf32>
      %cst_38 = arith.constant 1.000000e+00 : f32
      %149 = vector.broadcast %cst_38 : f32 to vector<4x128xf32>
      %150 = arith.addf %148, %149 : vector<4x128xf32>
      %cst_39 = arith.constant 5.000000e-01 : f32
      %151 = vector.broadcast %cst_39 : f32 to vector<4x128xf32>
      %152 = arith.mulf %151, %150 : vector<4x128xf32>
      %153 = arith.mulf %145, %152 : vector<4x128xf32>
      %154 = vector.extract_strided_slice %10 {offsets = [0, 7], sizes = [4, 1], strides = [1, 1]} : vector<4x16xf32> to vector<4x1xf32>
      %155 = vector.broadcast %154 : vector<4x1xf32> to vector<4x128xf32>
      %156 = arith.mulf %153, %155 : vector<4x128xf32>
      %157 = arith.addf %139, %156 : vector<4x128xf32>
      %158 = vector.extract_strided_slice %8 {offsets = [0, 8], sizes = [4, 1], strides = [1, 1]} : vector<4x16xf32> to vector<4x1xf32>
      %159 = vector.broadcast %158 : vector<4x1xf32> to vector<4x128xf32>
      %160 = arith.mulf %7, %159 : vector<4x128xf32>
      %161 = vector.extract_strided_slice %9 {offsets = [0, 8], sizes = [4, 1], strides = [1, 1]} : vector<4x16xf32> to vector<4x1xf32>
      %162 = vector.broadcast %161 : vector<4x1xf32> to vector<4x128xf32>
      %163 = arith.addf %160, %162 : vector<4x128xf32>
      %cst_40 = arith.constant 5.000000e-01 : f32
      %164 = vector.broadcast %cst_40 : f32 to vector<4x128xf32>
      %165 = arith.mulf %164, %163 : vector<4x128xf32>
      %166 = math.tanh %165 : vector<4x128xf32>
      %cst_41 = arith.constant 1.000000e+00 : f32
      %167 = vector.broadcast %cst_41 : f32 to vector<4x128xf32>
      %168 = arith.addf %166, %167 : vector<4x128xf32>
      %cst_42 = arith.constant 5.000000e-01 : f32
      %169 = vector.broadcast %cst_42 : f32 to vector<4x128xf32>
      %170 = arith.mulf %169, %168 : vector<4x128xf32>
      %171 = arith.mulf %163, %170 : vector<4x128xf32>
      %172 = vector.extract_strided_slice %10 {offsets = [0, 8], sizes = [4, 1], strides = [1, 1]} : vector<4x16xf32> to vector<4x1xf32>
      %173 = vector.broadcast %172 : vector<4x1xf32> to vector<4x128xf32>
      %174 = arith.mulf %171, %173 : vector<4x128xf32>
      %175 = arith.addf %157, %174 : vector<4x128xf32>
      %176 = vector.extract_strided_slice %8 {offsets = [0, 9], sizes = [4, 1], strides = [1, 1]} : vector<4x16xf32> to vector<4x1xf32>
      %177 = vector.broadcast %176 : vector<4x1xf32> to vector<4x128xf32>
      %178 = arith.mulf %7, %177 : vector<4x128xf32>
      %179 = vector.extract_strided_slice %9 {offsets = [0, 9], sizes = [4, 1], strides = [1, 1]} : vector<4x16xf32> to vector<4x1xf32>
      %180 = vector.broadcast %179 : vector<4x1xf32> to vector<4x128xf32>
      %181 = arith.addf %178, %180 : vector<4x128xf32>
      %cst_43 = arith.constant 5.000000e-01 : f32
      %182 = vector.broadcast %cst_43 : f32 to vector<4x128xf32>
      %183 = arith.mulf %182, %181 : vector<4x128xf32>
      %184 = math.tanh %183 : vector<4x128xf32>
      %cst_44 = arith.constant 1.000000e+00 : f32
      %185 = vector.broadcast %cst_44 : f32 to vector<4x128xf32>
      %186 = arith.addf %184, %185 : vector<4x128xf32>
      %cst_45 = arith.constant 5.000000e-01 : f32
      %187 = vector.broadcast %cst_45 : f32 to vector<4x128xf32>
      %188 = arith.mulf %187, %186 : vector<4x128xf32>
      %189 = arith.mulf %181, %188 : vector<4x128xf32>
      %190 = vector.extract_strided_slice %10 {offsets = [0, 9], sizes = [4, 1], strides = [1, 1]} : vector<4x16xf32> to vector<4x1xf32>
      %191 = vector.broadcast %190 : vector<4x1xf32> to vector<4x128xf32>
      %192 = arith.mulf %189, %191 : vector<4x128xf32>
      %193 = arith.addf %175, %192 : vector<4x128xf32>
      %194 = vector.extract_strided_slice %8 {offsets = [0, 10], sizes = [4, 1], strides = [1, 1]} : vector<4x16xf32> to vector<4x1xf32>
      %195 = vector.broadcast %194 : vector<4x1xf32> to vector<4x128xf32>
      %196 = arith.mulf %7, %195 : vector<4x128xf32>
      %197 = vector.extract_strided_slice %9 {offsets = [0, 10], sizes = [4, 1], strides = [1, 1]} : vector<4x16xf32> to vector<4x1xf32>
      %198 = vector.broadcast %197 : vector<4x1xf32> to vector<4x128xf32>
      %199 = arith.addf %196, %198 : vector<4x128xf32>
      %cst_46 = arith.constant 5.000000e-01 : f32
      %200 = vector.broadcast %cst_46 : f32 to vector<4x128xf32>
      %201 = arith.mulf %200, %199 : vector<4x128xf32>
      %202 = math.tanh %201 : vector<4x128xf32>
      %cst_47 = arith.constant 1.000000e+00 : f32
      %203 = vector.broadcast %cst_47 : f32 to vector<4x128xf32>
      %204 = arith.addf %202, %203 : vector<4x128xf32>
      %cst_48 = arith.constant 5.000000e-01 : f32
      %205 = vector.broadcast %cst_48 : f32 to vector<4x128xf32>
      %206 = arith.mulf %205, %204 : vector<4x128xf32>
      %207 = arith.mulf %199, %206 : vector<4x128xf32>
      %208 = vector.extract_strided_slice %10 {offsets = [0, 10], sizes = [4, 1], strides = [1, 1]} : vector<4x16xf32> to vector<4x1xf32>
      %209 = vector.broadcast %208 : vector<4x1xf32> to vector<4x128xf32>
      %210 = arith.mulf %207, %209 : vector<4x128xf32>
      %211 = arith.addf %193, %210 : vector<4x128xf32>
      %212 = vector.extract_strided_slice %8 {offsets = [0, 11], sizes = [4, 1], strides = [1, 1]} : vector<4x16xf32> to vector<4x1xf32>
      %213 = vector.broadcast %212 : vector<4x1xf32> to vector<4x128xf32>
      %214 = arith.mulf %7, %213 : vector<4x128xf32>
      %215 = vector.extract_strided_slice %9 {offsets = [0, 11], sizes = [4, 1], strides = [1, 1]} : vector<4x16xf32> to vector<4x1xf32>
      %216 = vector.broadcast %215 : vector<4x1xf32> to vector<4x128xf32>
      %217 = arith.addf %214, %216 : vector<4x128xf32>
      %cst_49 = arith.constant 5.000000e-01 : f32
      %218 = vector.broadcast %cst_49 : f32 to vector<4x128xf32>
      %219 = arith.mulf %218, %217 : vector<4x128xf32>
      %220 = math.tanh %219 : vector<4x128xf32>
      %cst_50 = arith.constant 1.000000e+00 : f32
      %221 = vector.broadcast %cst_50 : f32 to vector<4x128xf32>
      %222 = arith.addf %220, %221 : vector<4x128xf32>
      %cst_51 = arith.constant 5.000000e-01 : f32
      %223 = vector.broadcast %cst_51 : f32 to vector<4x128xf32>
      %224 = arith.mulf %223, %222 : vector<4x128xf32>
      %225 = arith.mulf %217, %224 : vector<4x128xf32>
      %226 = vector.extract_strided_slice %10 {offsets = [0, 11], sizes = [4, 1], strides = [1, 1]} : vector<4x16xf32> to vector<4x1xf32>
      %227 = vector.broadcast %226 : vector<4x1xf32> to vector<4x128xf32>
      %228 = arith.mulf %225, %227 : vector<4x128xf32>
      %229 = arith.addf %211, %228 : vector<4x128xf32>
      %230 = vector.extract_strided_slice %8 {offsets = [0, 12], sizes = [4, 1], strides = [1, 1]} : vector<4x16xf32> to vector<4x1xf32>
      %231 = vector.broadcast %230 : vector<4x1xf32> to vector<4x128xf32>
      %232 = arith.mulf %7, %231 : vector<4x128xf32>
      %233 = vector.extract_strided_slice %9 {offsets = [0, 12], sizes = [4, 1], strides = [1, 1]} : vector<4x16xf32> to vector<4x1xf32>
      %234 = vector.broadcast %233 : vector<4x1xf32> to vector<4x128xf32>
      %235 = arith.addf %232, %234 : vector<4x128xf32>
      %cst_52 = arith.constant 5.000000e-01 : f32
      %236 = vector.broadcast %cst_52 : f32 to vector<4x128xf32>
      %237 = arith.mulf %236, %235 : vector<4x128xf32>
      %238 = math.tanh %237 : vector<4x128xf32>
      %cst_53 = arith.constant 1.000000e+00 : f32
      %239 = vector.broadcast %cst_53 : f32 to vector<4x128xf32>
      %240 = arith.addf %238, %239 : vector<4x128xf32>
      %cst_54 = arith.constant 5.000000e-01 : f32
      %241 = vector.broadcast %cst_54 : f32 to vector<4x128xf32>
      %242 = arith.mulf %241, %240 : vector<4x128xf32>
      %243 = arith.mulf %235, %242 : vector<4x128xf32>
      %244 = vector.extract_strided_slice %10 {offsets = [0, 12], sizes = [4, 1], strides = [1, 1]} : vector<4x16xf32> to vector<4x1xf32>
      %245 = vector.broadcast %244 : vector<4x1xf32> to vector<4x128xf32>
      %246 = arith.mulf %243, %245 : vector<4x128xf32>
      %247 = arith.addf %229, %246 : vector<4x128xf32>
      %248 = vector.extract_strided_slice %8 {offsets = [0, 13], sizes = [4, 1], strides = [1, 1]} : vector<4x16xf32> to vector<4x1xf32>
      %249 = vector.broadcast %248 : vector<4x1xf32> to vector<4x128xf32>
      %250 = arith.mulf %7, %249 : vector<4x128xf32>
      %251 = vector.extract_strided_slice %9 {offsets = [0, 13], sizes = [4, 1], strides = [1, 1]} : vector<4x16xf32> to vector<4x1xf32>
      %252 = vector.broadcast %251 : vector<4x1xf32> to vector<4x128xf32>
      %253 = arith.addf %250, %252 : vector<4x128xf32>
      %cst_55 = arith.constant 5.000000e-01 : f32
      %254 = vector.broadcast %cst_55 : f32 to vector<4x128xf32>
      %255 = arith.mulf %254, %253 : vector<4x128xf32>
      %256 = math.tanh %255 : vector<4x128xf32>
      %cst_56 = arith.constant 1.000000e+00 : f32
      %257 = vector.broadcast %cst_56 : f32 to vector<4x128xf32>
      %258 = arith.addf %256, %257 : vector<4x128xf32>
      %cst_57 = arith.constant 5.000000e-01 : f32
      %259 = vector.broadcast %cst_57 : f32 to vector<4x128xf32>
      %260 = arith.mulf %259, %258 : vector<4x128xf32>
      %261 = arith.mulf %253, %260 : vector<4x128xf32>
      %262 = vector.extract_strided_slice %10 {offsets = [0, 13], sizes = [4, 1], strides = [1, 1]} : vector<4x16xf32> to vector<4x1xf32>
      %263 = vector.broadcast %262 : vector<4x1xf32> to vector<4x128xf32>
      %264 = arith.mulf %261, %263 : vector<4x128xf32>
      %265 = arith.addf %247, %264 : vector<4x128xf32>
      %266 = vector.extract_strided_slice %8 {offsets = [0, 14], sizes = [4, 1], strides = [1, 1]} : vector<4x16xf32> to vector<4x1xf32>
      %267 = vector.broadcast %266 : vector<4x1xf32> to vector<4x128xf32>
      %268 = arith.mulf %7, %267 : vector<4x128xf32>
      %269 = vector.extract_strided_slice %9 {offsets = [0, 14], sizes = [4, 1], strides = [1, 1]} : vector<4x16xf32> to vector<4x1xf32>
      %270 = vector.broadcast %269 : vector<4x1xf32> to vector<4x128xf32>
      %271 = arith.addf %268, %270 : vector<4x128xf32>
      %cst_58 = arith.constant 5.000000e-01 : f32
      %272 = vector.broadcast %cst_58 : f32 to vector<4x128xf32>
      %273 = arith.mulf %272, %271 : vector<4x128xf32>
      %274 = math.tanh %273 : vector<4x128xf32>
      %cst_59 = arith.constant 1.000000e+00 : f32
      %275 = vector.broadcast %cst_59 : f32 to vector<4x128xf32>
      %276 = arith.addf %274, %275 : vector<4x128xf32>
      %cst_60 = arith.constant 5.000000e-01 : f32
      %277 = vector.broadcast %cst_60 : f32 to vector<4x128xf32>
      %278 = arith.mulf %277, %276 : vector<4x128xf32>
      %279 = arith.mulf %271, %278 : vector<4x128xf32>
      %280 = vector.extract_strided_slice %10 {offsets = [0, 14], sizes = [4, 1], strides = [1, 1]} : vector<4x16xf32> to vector<4x1xf32>
      %281 = vector.broadcast %280 : vector<4x1xf32> to vector<4x128xf32>
      %282 = arith.mulf %279, %281 : vector<4x128xf32>
      %283 = arith.addf %265, %282 : vector<4x128xf32>
      %284 = vector.extract_strided_slice %8 {offsets = [0, 15], sizes = [4, 1], strides = [1, 1]} : vector<4x16xf32> to vector<4x1xf32>
      %285 = vector.broadcast %284 : vector<4x1xf32> to vector<4x128xf32>
      %286 = arith.mulf %7, %285 : vector<4x128xf32>
      %287 = vector.extract_strided_slice %9 {offsets = [0, 15], sizes = [4, 1], strides = [1, 1]} : vector<4x16xf32> to vector<4x1xf32>
      %288 = vector.broadcast %287 : vector<4x1xf32> to vector<4x128xf32>
      %289 = arith.addf %286, %288 : vector<4x128xf32>
      %cst_61 = arith.constant 5.000000e-01 : f32
      %290 = vector.broadcast %cst_61 : f32 to vector<4x128xf32>
      %291 = arith.mulf %290, %289 : vector<4x128xf32>
      %292 = math.tanh %291 : vector<4x128xf32>
      %cst_62 = arith.constant 1.000000e+00 : f32
      %293 = vector.broadcast %cst_62 : f32 to vector<4x128xf32>
      %294 = arith.addf %292, %293 : vector<4x128xf32>
      %cst_63 = arith.constant 5.000000e-01 : f32
      %295 = vector.broadcast %cst_63 : f32 to vector<4x128xf32>
      %296 = arith.mulf %295, %294 : vector<4x128xf32>
      %297 = arith.mulf %289, %296 : vector<4x128xf32>
      %298 = vector.extract_strided_slice %10 {offsets = [0, 15], sizes = [4, 1], strides = [1, 1]} : vector<4x16xf32> to vector<4x1xf32>
      %299 = vector.broadcast %298 : vector<4x1xf32> to vector<4x128xf32>
      %300 = arith.mulf %297, %299 : vector<4x128xf32>
      %301 = arith.addf %283, %300 : vector<4x128xf32>
      %c0_64 = arith.constant 0 : index
      %c0_65 = arith.constant 0 : index
      %302 = vector.load %arg9[%c0_64, %c0_65] : memref<4x128xf32, #tpu.memory_space<vmem>>, vector<4x128xf32>
      tpu.vector_store %arg9[%c0_64, %c0_65], %301 {strides = array<i32>} : memref<4x128xf32, #tpu.memory_space<vmem>>, vector<4x128xf32>,
    } else {
    }
    %c0 = arith.constant 0 : index
    %c0_1 = arith.constant 0 : index
    %3 = vector.load %arg7[%c0, %c0_1] : memref<8x4xf32, #tpu.memory_space<vmem>>, vector<8x4xf32>
    %c0_2 = arith.constant 0 : index
    %c0_3 = arith.constant 0 : index
    %4 = vector.load %arg9[%c0_2, %c0_3] : memref<4x128xf32, #tpu.memory_space<vmem>>, vector<4x128xf32>
    %cst = arith.constant dense<0.000000e+00> : vector<8x128xf32>
    %5 = tpu.matmul %3, %4, %cst {dimension_numbers = #tpu.dot_dimension_numbers<[1], [0], [0], [1], [0, 0, 1, 1], [], []>} : vector<8x4xf32>, vector<4x128xf32>, vector<8x128xf32> -> vector<8x128xf32>
    %c0_4 = arith.constant 0 : index
    %c0_5 = arith.constant 0 : index
    %6 = vector.load %arg8[%c0_4, %c0_5] : memref<8x128xf32, #tpu.memory_space<vmem>>, vector<8x128xf32>
    tpu.vector_store %arg8[%c0_4, %c0_5], %5 {strides = array<i32>} : memref<8x128xf32, #tpu.memory_space<vmem>>, vector<8x128xf32>,
    return
  }
  func.func @transform_0(%arg0: i32, %arg1: i32) -> (i32, i32) {
    %c0_i32 = arith.constant 0 : i32
    %c0_i32_0 = arith.constant 0 : i32
    return %c0_i32, %arg0 : i32, i32
  }
  func.func @transform_1(%arg0: i32, %arg1: i32) -> (i32, i32) {
    %c0_i32 = arith.constant 0 : i32
    %c0_i32_0 = arith.constant 0 : i32
    %c0_i32_1 = arith.constant 0 : i32
    return %c0_i32, %c0_i32_0 : i32, i32
  }
  func.func @transform_2(%arg0: i32, %arg1: i32) -> (i32, i32) {
    %c0_i32 = arith.constant 0 : i32
    %c0_i32_0 = arith.constant 0 : i32
    %c0_i32_1 = arith.constant 0 : i32
    return %c0_i32, %c0_i32_0 : i32, i32
  }
  func.func @transform_3(%arg0: i32, %arg1: i32) -> (i32, i32) {
    %c0_i32 = arith.constant 0 : i32
    %c0_i32_0 = arith.constant 0 : i32
    %c0_i32_1 = arith.constant 0 : i32
    return %c0_i32, %c0_i32_0 : i32, i32
  }
  func.func @transform_4(%arg0: i32, %arg1: i32) -> (i32, i32) {
    %c0_i32 = arith.constant 0 : i32
    %c0_i32_0 = arith.constant 0 : i32
    %c0_i32_1 = arith.constant 0 : i32
    return %c0_i32, %c0_i32_0 : i32, i32
  }
  func.func @transform_5(%arg0: i32, %arg1: i32) -> (i32, i32) {
    %c0_i32 = arith.constant 0 : i32
    %c0_i32_0 = arith.constant 0 : i32
    return %arg1, %c0_i32 : i32, i32
  }
  func.func @transform_6(%arg0: i32, %arg1: i32) -> (i32, i32) {
    %c0_i32 = arith.constant 0 : i32
    return %arg1, %arg0 : i32, i32
  }
}

module attributes {stable_mosaic.version = 11 : i64} {
  func.func @_kan_kernel(%arg0: i32, %arg1: i32, %arg2: memref<4x128xf32, #tpu.memory_space<vmem>>, %arg3: memref<4x16xf32, #tpu.memory_space<vmem>>, %arg4: memref<4x16xf32, #tpu.memory_space<vmem>>, %arg5: memref<4x16xf32, #tpu.memory_space<vmem>>, %arg6: memref<4x1xf32, #tpu.memory_space<vmem>>, %arg7: memref<8x4xf32, #tpu.memory_space<vmem>>, %arg8: memref<8x128xf32, #tpu.memory_space<vmem>>, %arg9: memref<4x128xf32, #tpu.memory_space<vmem>>) attributes {dimension_semantics = [#tpu.dimension_semantics<parallel>, #tpu.dimension_semantics<arbitrary>], iteration_bounds = array<i64: 1, 1>, scalar_prefetch = 0 : i64, scratch_operands = 1 : i64, tpu.core_type = #tpu.core_type<tc>, window_params = [{transform_indices = @transform_0, window_bounds = array<i64: 4, 128>}, {pipeline_mode = #tpu.pipeline_mode<synchronous>, transform_indices = @transform_1, window_bounds = array<i64: 4, 16>}, {pipeline_mode = #tpu.pipeline_mode<synchronous>, transform_indices = @transform_2, window_bounds = array<i64: 4, 16>}, {pipeline_mode = #tpu.pipeline_mode<synchronous>, transform_indices = @transform_3, window_bounds = array<i64: 4, 16>}, {pipeline_mode = #tpu.pipeline_mode<synchronous>, transform_indices = @transform_4, window_bounds = array<i64: 4, 1>}, {transform_indices = @transform_5, window_bounds = array<i64: 8, 4>}, {transform_indices = @transform_6, window_bounds = array<i64: 8, 128>}]} {
    %c0_i32 = arith.constant 0 : i32
    %0 = arith.cmpi eq, %arg1, %c0_i32 : i32
    %1 = arith.extui %0 : i1 to i32
    %c0_i32_0 = arith.constant 0 : i32
    %2 = arith.cmpi ne, %1, %c0_i32_0 : i32
    scf.if %2 {
      %c0_6 = arith.constant 0 : index
      %c0_7 = arith.constant 0 : index
      %7 = vector.load %arg2[%c0_6, %c0_7] : memref<4x128xf32, #tpu.memory_space<vmem>>, vector<4x128xf32>
      %c0_8 = arith.constant 0 : index
      %c0_9 = arith.constant 0 : index
      %8 = vector.load %arg3[%c0_8, %c0_9] : memref<4x16xf32, #tpu.memory_space<vmem>>, vector<4x16xf32>
      %c0_10 = arith.constant 0 : index
      %c0_11 = arith.constant 0 : index
      %9 = vector.load %arg4[%c0_10, %c0_11] : memref<4x16xf32, #tpu.memory_space<vmem>>, vector<4x16xf32>
      %c0_12 = arith.constant 0 : index
      %c0_13 = arith.constant 0 : index
      %10 = vector.load %arg5[%c0_12, %c0_13] : memref<4x16xf32, #tpu.memory_space<vmem>>, vector<4x16xf32>
      %c0_14 = arith.constant 0 : index
      %c0_15 = arith.constant 0 : index
      %11 = vector.load %arg6[%c0_14, %c0_15] : memref<4x1xf32, #tpu.memory_space<vmem>>, vector<4x1xf32>
      %12 = vector.shape_cast %11 : vector<4x1xf32> to vector<4x1xf32>
      %13 = vector.broadcast %12 : vector<4x1xf32> to vector<4x128xf32>
      %14 = vector.extract_strided_slice %8 {offsets = [0, 0], sizes = [4, 1], strides = [1, 1]} : vector<4x16xf32> to vector<4x1xf32>
      %15 = vector.broadcast %14 : vector<4x1xf32> to vector<4x128xf32>
      %16 = arith.mulf %7, %15 : vector<4x128xf32>
      %17 = vector.extract_strided_slice %9 {offsets = [0, 0], sizes = [4, 1], strides = [1, 1]} : vector<4x16xf32> to vector<4x1xf32>
      %18 = vector.broadcast %17 : vector<4x1xf32> to vector<4x128xf32>
      %19 = arith.addf %16, %18 : vector<4x128xf32>
      %cst_16 = arith.constant 5.000000e-01 : f32
      %20 = vector.broadcast %cst_16 : f32 to vector<4x128xf32>
      %21 = arith.mulf %20, %19 : vector<4x128xf32>
      %22 = math.tanh %21 : vector<4x128xf32>
      %cst_17 = arith.constant 1.000000e+00 : f32
      %23 = vector.broadcast %cst_17 : f32 to vector<4x128xf32>
      %24 = arith.addf %22, %23 : vector<4x128xf32>
      %cst_18 = arith.constant 5.000000e-01 : f32
      %25 = vector.broadcast %cst_18 : f32 to vector<4x128xf32>
      %26 = arith.mulf %25, %24 : vector<4x128xf32>
      %27 = arith.mulf %19, %26 : vector<4x128xf32>
      %28 = vector.extract_strided_slice %10 {offsets = [0, 0], sizes = [4, 1], strides = [1, 1]} : vector<4x16xf32> to vector<4x1xf32>
      %29 = vector.broadcast %28 : vector<4x1xf32> to vector<4x128xf32>
      %30 = arith.mulf %27, %29 : vector<4x128xf32>
      %31 = arith.addf %13, %30 : vector<4x128xf32>
      %32 = vector.extract_strided_slice %8 {offsets = [0, 1], sizes = [4, 1], strides = [1, 1]} : vector<4x16xf32> to vector<4x1xf32>
      %33 = vector.broadcast %32 : vector<4x1xf32> to vector<4x128xf32>
      %34 = arith.mulf %7, %33 : vector<4x128xf32>
      %35 = vector.extract_strided_slice %9 {offsets = [0, 1], sizes = [4, 1], strides = [1, 1]} : vector<4x16xf32> to vector<4x1xf32>
      %36 = vector.broadcast %35 : vector<4x1xf32> to vector<4x128xf32>
      %37 = arith.addf %34, %36 : vector<4x128xf32>
      %cst_19 = arith.constant 5.000000e-01 : f32
      %38 = vector.broadcast %cst_19 : f32 to vector<4x128xf32>
      %39 = arith.mulf %38, %37 : vector<4x128xf32>
      %40 = math.tanh %39 : vector<4x128xf32>
      %cst_20 = arith.constant 1.000000e+00 : f32
      %41 = vector.broadcast %cst_20 : f32 to vector<4x128xf32>
      %42 = arith.addf %40, %41 : vector<4x128xf32>
      %cst_21 = arith.constant 5.000000e-01 : f32
      %43 = vector.broadcast %cst_21 : f32 to vector<4x128xf32>
      %44 = arith.mulf %43, %42 : vector<4x128xf32>
      %45 = arith.mulf %37, %44 : vector<4x128xf32>
      %46 = vector.extract_strided_slice %10 {offsets = [0, 1], sizes = [4, 1], strides = [1, 1]} : vector<4x16xf32> to vector<4x1xf32>
      %47 = vector.broadcast %46 : vector<4x1xf32> to vector<4x128xf32>
      %48 = arith.mulf %45, %47 : vector<4x128xf32>
      %49 = arith.addf %31, %48 : vector<4x128xf32>
      %50 = vector.extract_strided_slice %8 {offsets = [0, 2], sizes = [4, 1], strides = [1, 1]} : vector<4x16xf32> to vector<4x1xf32>
      %51 = vector.broadcast %50 : vector<4x1xf32> to vector<4x128xf32>
      %52 = arith.mulf %7, %51 : vector<4x128xf32>
      %53 = vector.extract_strided_slice %9 {offsets = [0, 2], sizes = [4, 1], strides = [1, 1]} : vector<4x16xf32> to vector<4x1xf32>
      %54 = vector.broadcast %53 : vector<4x1xf32> to vector<4x128xf32>
      %55 = arith.addf %52, %54 : vector<4x128xf32>
      %cst_22 = arith.constant 5.000000e-01 : f32
      %56 = vector.broadcast %cst_22 : f32 to vector<4x128xf32>
      %57 = arith.mulf %56, %55 : vector<4x128xf32>
      %58 = math.tanh %57 : vector<4x128xf32>
      %cst_23 = arith.constant 1.000000e+00 : f32
      %59 = vector.broadcast %cst_23 : f32 to vector<4x128xf32>
      %60 = arith.addf %58, %59 : vector<4x128xf32>
      %cst_24 = arith.constant 5.000000e-01 : f32
      %61 = vector.broadcast %cst_24 : f32 to vector<4x128xf32>
      %62 = arith.mulf %61, %60 : vector<4x128xf32>
      %63 = arith.mulf %55, %62 : vector<4x128xf32>
      %64 = vector.extract_strided_slice %10 {offsets = [0, 2], sizes = [4, 1], strides = [1, 1]} : vector<4x16xf32> to vector<4x1xf32>
      %65 = vector.broadcast %64 : vector<4x1xf32> to vector<4x128xf32>
      %66 = arith.mulf %63, %65 : vector<4x128xf32>
      %67 = arith.addf %49, %66 : vector<4x128xf32>
      %68 = vector.extract_strided_slice %8 {offsets = [0, 3], sizes = [4, 1], strides = [1, 1]} : vector<4x16xf32> to vector<4x1xf32>
      %69 = vector.broadcast %68 : vector<4x1xf32> to vector<4x128xf32>
      %70 = arith.mulf %7, %69 : vector<4x128xf32>
      %71 = vector.extract_strided_slice %9 {offsets = [0, 3], sizes = [4, 1], strides = [1, 1]} : vector<4x16xf32> to vector<4x1xf32>
      %72 = vector.broadcast %71 : vector<4x1xf32> to vector<4x128xf32>
      %73 = arith.addf %70, %72 : vector<4x128xf32>
      %cst_25 = arith.constant 5.000000e-01 : f32
      %74 = vector.broadcast %cst_25 : f32 to vector<4x128xf32>
      %75 = arith.mulf %74, %73 : vector<4x128xf32>
      %76 = math.tanh %75 : vector<4x128xf32>
      %cst_26 = arith.constant 1.000000e+00 : f32
      %77 = vector.broadcast %cst_26 : f32 to vector<4x128xf32>
      %78 = arith.addf %76, %77 : vector<4x128xf32>
      %cst_27 = arith.constant 5.000000e-01 : f32
      %79 = vector.broadcast %cst_27 : f32 to vector<4x128xf32>
      %80 = arith.mulf %79, %78 : vector<4x128xf32>
      %81 = arith.mulf %73, %80 : vector<4x128xf32>
      %82 = vector.extract_strided_slice %10 {offsets = [0, 3], sizes = [4, 1], strides = [1, 1]} : vector<4x16xf32> to vector<4x1xf32>
      %83 = vector.broadcast %82 : vector<4x1xf32> to vector<4x128xf32>
      %84 = arith.mulf %81, %83 : vector<4x128xf32>
      %85 = arith.addf %67, %84 : vector<4x128xf32>
      %86 = vector.extract_strided_slice %8 {offsets = [0, 4], sizes = [4, 1], strides = [1, 1]} : vector<4x16xf32> to vector<4x1xf32>
      %87 = vector.broadcast %86 : vector<4x1xf32> to vector<4x128xf32>
      %88 = arith.mulf %7, %87 : vector<4x128xf32>
      %89 = vector.extract_strided_slice %9 {offsets = [0, 4], sizes = [4, 1], strides = [1, 1]} : vector<4x16xf32> to vector<4x1xf32>
      %90 = vector.broadcast %89 : vector<4x1xf32> to vector<4x128xf32>
      %91 = arith.addf %88, %90 : vector<4x128xf32>
      %cst_28 = arith.constant 5.000000e-01 : f32
      %92 = vector.broadcast %cst_28 : f32 to vector<4x128xf32>
      %93 = arith.mulf %92, %91 : vector<4x128xf32>
      %94 = math.tanh %93 : vector<4x128xf32>
      %cst_29 = arith.constant 1.000000e+00 : f32
      %95 = vector.broadcast %cst_29 : f32 to vector<4x128xf32>
      %96 = arith.addf %94, %95 : vector<4x128xf32>
      %cst_30 = arith.constant 5.000000e-01 : f32
      %97 = vector.broadcast %cst_30 : f32 to vector<4x128xf32>
      %98 = arith.mulf %97, %96 : vector<4x128xf32>
      %99 = arith.mulf %91, %98 : vector<4x128xf32>
      %100 = vector.extract_strided_slice %10 {offsets = [0, 4], sizes = [4, 1], strides = [1, 1]} : vector<4x16xf32> to vector<4x1xf32>
      %101 = vector.broadcast %100 : vector<4x1xf32> to vector<4x128xf32>
      %102 = arith.mulf %99, %101 : vector<4x128xf32>
      %103 = arith.addf %85, %102 : vector<4x128xf32>
      %104 = vector.extract_strided_slice %8 {offsets = [0, 5], sizes = [4, 1], strides = [1, 1]} : vector<4x16xf32> to vector<4x1xf32>
      %105 = vector.broadcast %104 : vector<4x1xf32> to vector<4x128xf32>
      %106 = arith.mulf %7, %105 : vector<4x128xf32>
      %107 = vector.extract_strided_slice %9 {offsets = [0, 5], sizes = [4, 1], strides = [1, 1]} : vector<4x16xf32> to vector<4x1xf32>
      %108 = vector.broadcast %107 : vector<4x1xf32> to vector<4x128xf32>
      %109 = arith.addf %106, %108 : vector<4x128xf32>
      %cst_31 = arith.constant 5.000000e-01 : f32
      %110 = vector.broadcast %cst_31 : f32 to vector<4x128xf32>
      %111 = arith.mulf %110, %109 : vector<4x128xf32>
      %112 = math.tanh %111 : vector<4x128xf32>
      %cst_32 = arith.constant 1.000000e+00 : f32
      %113 = vector.broadcast %cst_32 : f32 to vector<4x128xf32>
      %114 = arith.addf %112, %113 : vector<4x128xf32>
      %cst_33 = arith.constant 5.000000e-01 : f32
      %115 = vector.broadcast %cst_33 : f32 to vector<4x128xf32>
      %116 = arith.mulf %115, %114 : vector<4x128xf32>
      %117 = arith.mulf %109, %116 : vector<4x128xf32>
      %118 = vector.extract_strided_slice %10 {offsets = [0, 5], sizes = [4, 1], strides = [1, 1]} : vector<4x16xf32> to vector<4x1xf32>
      %119 = vector.broadcast %118 : vector<4x1xf32> to vector<4x128xf32>
      %120 = arith.mulf %117, %119 : vector<4x128xf32>
      %121 = arith.addf %103, %120 : vector<4x128xf32>
      %122 = vector.extract_strided_slice %8 {offsets = [0, 6], sizes = [4, 1], strides = [1, 1]} : vector<4x16xf32> to vector<4x1xf32>
      %123 = vector.broadcast %122 : vector<4x1xf32> to vector<4x128xf32>
      %124 = arith.mulf %7, %123 : vector<4x128xf32>
      %125 = vector.extract_strided_slice %9 {offsets = [0, 6], sizes = [4, 1], strides = [1, 1]} : vector<4x16xf32> to vector<4x1xf32>
      %126 = vector.broadcast %125 : vector<4x1xf32> to vector<4x128xf32>
      %127 = arith.addf %124, %126 : vector<4x128xf32>
      %cst_34 = arith.constant 5.000000e-01 : f32
      %128 = vector.broadcast %cst_34 : f32 to vector<4x128xf32>
      %129 = arith.mulf %128, %127 : vector<4x128xf32>
      %130 = math.tanh %129 : vector<4x128xf32>
      %cst_35 = arith.constant 1.000000e+00 : f32
      %131 = vector.broadcast %cst_35 : f32 to vector<4x128xf32>
      %132 = arith.addf %130, %131 : vector<4x128xf32>
      %cst_36 = arith.constant 5.000000e-01 : f32
      %133 = vector.broadcast %cst_36 : f32 to vector<4x128xf32>
      %134 = arith.mulf %133, %132 : vector<4x128xf32>
      %135 = arith.mulf %127, %134 : vector<4x128xf32>
      %136 = vector.extract_strided_slice %10 {offsets = [0, 6], sizes = [4, 1], strides = [1, 1]} : vector<4x16xf32> to vector<4x1xf32>
      %137 = vector.broadcast %136 : vector<4x1xf32> to vector<4x128xf32>
      %138 = arith.mulf %135, %137 : vector<4x128xf32>
      %139 = arith.addf %121, %138 : vector<4x128xf32>
      %140 = vector.extract_strided_slice %8 {offsets = [0, 7], sizes = [4, 1], strides = [1, 1]} : vector<4x16xf32> to vector<4x1xf32>
      %141 = vector.broadcast %140 : vector<4x1xf32> to vector<4x128xf32>
      %142 = arith.mulf %7, %141 : vector<4x128xf32>
      %143 = vector.extract_strided_slice %9 {offsets = [0, 7], sizes = [4, 1], strides = [1, 1]} : vector<4x16xf32> to vector<4x1xf32>
      %144 = vector.broadcast %143 : vector<4x1xf32> to vector<4x128xf32>
      %145 = arith.addf %142, %144 : vector<4x128xf32>
      %cst_37 = arith.constant 5.000000e-01 : f32
      %146 = vector.broadcast %cst_37 : f32 to vector<4x128xf32>
      %147 = arith.mulf %146, %145 : vector<4x128xf32>
      %148 = math.tanh %147 : vector<4x128xf32>
      %cst_38 = arith.constant 1.000000e+00 : f32
      %149 = vector.broadcast %cst_38 : f32 to vector<4x128xf32>
      %150 = arith.addf %148, %149 : vector<4x128xf32>
      %cst_39 = arith.constant 5.000000e-01 : f32
      %151 = vector.broadcast %cst_39 : f32 to vector<4x128xf32>
      %152 = arith.mulf %151, %150 : vector<4x128xf32>
      %153 = arith.mulf %145, %152 : vector<4x128xf32>
      %154 = vector.extract_strided_slice %10 {offsets = [0, 7], sizes = [4, 1], strides = [1, 1]} : vector<4x16xf32> to vector<4x1xf32>
      %155 = vector.broadcast %154 : vector<4x1xf32> to vector<4x128xf32>
      %156 = arith.mulf %153, %155 : vector<4x128xf32>
      %157 = arith.addf %139, %156 : vector<4x128xf32>
      %158 = vector.extract_strided_slice %8 {offsets = [0, 8], sizes = [4, 1], strides = [1, 1]} : vector<4x16xf32> to vector<4x1xf32>
      %159 = vector.broadcast %158 : vector<4x1xf32> to vector<4x128xf32>
      %160 = arith.mulf %7, %159 : vector<4x128xf32>
      %161 = vector.extract_strided_slice %9 {offsets = [0, 8], sizes = [4, 1], strides = [1, 1]} : vector<4x16xf32> to vector<4x1xf32>
      %162 = vector.broadcast %161 : vector<4x1xf32> to vector<4x128xf32>
      %163 = arith.addf %160, %162 : vector<4x128xf32>
      %cst_40 = arith.constant 5.000000e-01 : f32
      %164 = vector.broadcast %cst_40 : f32 to vector<4x128xf32>
      %165 = arith.mulf %164, %163 : vector<4x128xf32>
      %166 = math.tanh %165 : vector<4x128xf32>
      %cst_41 = arith.constant 1.000000e+00 : f32
      %167 = vector.broadcast %cst_41 : f32 to vector<4x128xf32>
      %168 = arith.addf %166, %167 : vector<4x128xf32>
      %cst_42 = arith.constant 5.000000e-01 : f32
      %169 = vector.broadcast %cst_42 : f32 to vector<4x128xf32>
      %170 = arith.mulf %169, %168 : vector<4x128xf32>
      %171 = arith.mulf %163, %170 : vector<4x128xf32>
      %172 = vector.extract_strided_slice %10 {offsets = [0, 8], sizes = [4, 1], strides = [1, 1]} : vector<4x16xf32> to vector<4x1xf32>
      %173 = vector.broadcast %172 : vector<4x1xf32> to vector<4x128xf32>
      %174 = arith.mulf %171, %173 : vector<4x128xf32>
      %175 = arith.addf %157, %174 : vector<4x128xf32>
      %176 = vector.extract_strided_slice %8 {offsets = [0, 9], sizes = [4, 1], strides = [1, 1]} : vector<4x16xf32> to vector<4x1xf32>
      %177 = vector.broadcast %176 : vector<4x1xf32> to vector<4x128xf32>
      %178 = arith.mulf %7, %177 : vector<4x128xf32>
      %179 = vector.extract_strided_slice %9 {offsets = [0, 9], sizes = [4, 1], strides = [1, 1]} : vector<4x16xf32> to vector<4x1xf32>
      %180 = vector.broadcast %179 : vector<4x1xf32> to vector<4x128xf32>
      %181 = arith.addf %178, %180 : vector<4x128xf32>
      %cst_43 = arith.constant 5.000000e-01 : f32
      %182 = vector.broadcast %cst_43 : f32 to vector<4x128xf32>
      %183 = arith.mulf %182, %181 : vector<4x128xf32>
      %184 = math.tanh %183 : vector<4x128xf32>
      %cst_44 = arith.constant 1.000000e+00 : f32
      %185 = vector.broadcast %cst_44 : f32 to vector<4x128xf32>
      %186 = arith.addf %184, %185 : vector<4x128xf32>
      %cst_45 = arith.constant 5.000000e-01 : f32
      %187 = vector.broadcast %cst_45 : f32 to vector<4x128xf32>
      %188 = arith.mulf %187, %186 : vector<4x128xf32>
      %189 = arith.mulf %181, %188 : vector<4x128xf32>
      %190 = vector.extract_strided_slice %10 {offsets = [0, 9], sizes = [4, 1], strides = [1, 1]} : vector<4x16xf32> to vector<4x1xf32>
      %191 = vector.broadcast %190 : vector<4x1xf32> to vector<4x128xf32>
      %192 = arith.mulf %189, %191 : vector<4x128xf32>
      %193 = arith.addf %175, %192 : vector<4x128xf32>
      %194 = vector.extract_strided_slice %8 {offsets = [0, 10], sizes = [4, 1], strides = [1, 1]} : vector<4x16xf32> to vector<4x1xf32>
      %195 = vector.broadcast %194 : vector<4x1xf32> to vector<4x128xf32>
      %196 = arith.mulf %7, %195 : vector<4x128xf32>
      %197 = vector.extract_strided_slice %9 {offsets = [0, 10], sizes = [4, 1], strides = [1, 1]} : vector<4x16xf32> to vector<4x1xf32>
      %198 = vector.broadcast %197 : vector<4x1xf32> to vector<4x128xf32>
      %199 = arith.addf %196, %198 : vector<4x128xf32>
      %cst_46 = arith.constant 5.000000e-01 : f32
      %200 = vector.broadcast %cst_46 : f32 to vector<4x128xf32>
      %201 = arith.mulf %200, %199 : vector<4x128xf32>
      %202 = math.tanh %201 : vector<4x128xf32>
      %cst_47 = arith.constant 1.000000e+00 : f32
      %203 = vector.broadcast %cst_47 : f32 to vector<4x128xf32>
      %204 = arith.addf %202, %203 : vector<4x128xf32>
      %cst_48 = arith.constant 5.000000e-01 : f32
      %205 = vector.broadcast %cst_48 : f32 to vector<4x128xf32>
      %206 = arith.mulf %205, %204 : vector<4x128xf32>
      %207 = arith.mulf %199, %206 : vector<4x128xf32>
      %208 = vector.extract_strided_slice %10 {offsets = [0, 10], sizes = [4, 1], strides = [1, 1]} : vector<4x16xf32> to vector<4x1xf32>
      %209 = vector.broadcast %208 : vector<4x1xf32> to vector<4x128xf32>
      %210 = arith.mulf %207, %209 : vector<4x128xf32>
      %211 = arith.addf %193, %210 : vector<4x128xf32>
      %212 = vector.extract_strided_slice %8 {offsets = [0, 11], sizes = [4, 1], strides = [1, 1]} : vector<4x16xf32> to vector<4x1xf32>
      %213 = vector.broadcast %212 : vector<4x1xf32> to vector<4x128xf32>
      %214 = arith.mulf %7, %213 : vector<4x128xf32>
      %215 = vector.extract_strided_slice %9 {offsets = [0, 11], sizes = [4, 1], strides = [1, 1]} : vector<4x16xf32> to vector<4x1xf32>
      %216 = vector.broadcast %215 : vector<4x1xf32> to vector<4x128xf32>
      %217 = arith.addf %214, %216 : vector<4x128xf32>
      %cst_49 = arith.constant 5.000000e-01 : f32
      %218 = vector.broadcast %cst_49 : f32 to vector<4x128xf32>
      %219 = arith.mulf %218, %217 : vector<4x128xf32>
      %220 = math.tanh %219 : vector<4x128xf32>
      %cst_50 = arith.constant 1.000000e+00 : f32
      %221 = vector.broadcast %cst_50 : f32 to vector<4x128xf32>
      %222 = arith.addf %220, %221 : vector<4x128xf32>
      %cst_51 = arith.constant 5.000000e-01 : f32
      %223 = vector.broadcast %cst_51 : f32 to vector<4x128xf32>
      %224 = arith.mulf %223, %222 : vector<4x128xf32>
      %225 = arith.mulf %217, %224 : vector<4x128xf32>
      %226 = vector.extract_strided_slice %10 {offsets = [0, 11], sizes = [4, 1], strides = [1, 1]} : vector<4x16xf32> to vector<4x1xf32>
      %227 = vector.broadcast %226 : vector<4x1xf32> to vector<4x128xf32>
      %228 = arith.mulf %225, %227 : vector<4x128xf32>
      %229 = arith.addf %211, %228 : vector<4x128xf32>
      %230 = vector.extract_strided_slice %8 {offsets = [0, 12], sizes = [4, 1], strides = [1, 1]} : vector<4x16xf32> to vector<4x1xf32>
      %231 = vector.broadcast %230 : vector<4x1xf32> to vector<4x128xf32>
      %232 = arith.mulf %7, %231 : vector<4x128xf32>
      %233 = vector.extract_strided_slice %9 {offsets = [0, 12], sizes = [4, 1], strides = [1, 1]} : vector<4x16xf32> to vector<4x1xf32>
      %234 = vector.broadcast %233 : vector<4x1xf32> to vector<4x128xf32>
      %235 = arith.addf %232, %234 : vector<4x128xf32>
      %cst_52 = arith.constant 5.000000e-01 : f32
      %236 = vector.broadcast %cst_52 : f32 to vector<4x128xf32>
      %237 = arith.mulf %236, %235 : vector<4x128xf32>
      %238 = math.tanh %237 : vector<4x128xf32>
      %cst_53 = arith.constant 1.000000e+00 : f32
      %239 = vector.broadcast %cst_53 : f32 to vector<4x128xf32>
      %240 = arith.addf %238, %239 : vector<4x128xf32>
      %cst_54 = arith.constant 5.000000e-01 : f32
      %241 = vector.broadcast %cst_54 : f32 to vector<4x128xf32>
      %242 = arith.mulf %241, %240 : vector<4x128xf32>
      %243 = arith.mulf %235, %242 : vector<4x128xf32>
      %244 = vector.extract_strided_slice %10 {offsets = [0, 12], sizes = [4, 1], strides = [1, 1]} : vector<4x16xf32> to vector<4x1xf32>
      %245 = vector.broadcast %244 : vector<4x1xf32> to vector<4x128xf32>
      %246 = arith.mulf %243, %245 : vector<4x128xf32>
      %247 = arith.addf %229, %246 : vector<4x128xf32>
      %248 = vector.extract_strided_slice %8 {offsets = [0, 13], sizes = [4, 1], strides = [1, 1]} : vector<4x16xf32> to vector<4x1xf32>
      %249 = vector.broadcast %248 : vector<4x1xf32> to vector<4x128xf32>
      %250 = arith.mulf %7, %249 : vector<4x128xf32>
      %251 = vector.extract_strided_slice %9 {offsets = [0, 13], sizes = [4, 1], strides = [1, 1]} : vector<4x16xf32> to vector<4x1xf32>
      %252 = vector.broadcast %251 : vector<4x1xf32> to vector<4x128xf32>
      %253 = arith.addf %250, %252 : vector<4x128xf32>
      %cst_55 = arith.constant 5.000000e-01 : f32
      %254 = vector.broadcast %cst_55 : f32 to vector<4x128xf32>
      %255 = arith.mulf %254, %253 : vector<4x128xf32>
      %256 = math.tanh %255 : vector<4x128xf32>
      %cst_56 = arith.constant 1.000000e+00 : f32
      %257 = vector.broadcast %cst_56 : f32 to vector<4x128xf32>
      %258 = arith.addf %256, %257 : vector<4x128xf32>
      %cst_57 = arith.constant 5.000000e-01 : f32
      %259 = vector.broadcast %cst_57 : f32 to vector<4x128xf32>
      %260 = arith.mulf %259, %258 : vector<4x128xf32>
      %261 = arith.mulf %253, %260 : vector<4x128xf32>
      %262 = vector.extract_strided_slice %10 {offsets = [0, 13], sizes = [4, 1], strides = [1, 1]} : vector<4x16xf32> to vector<4x1xf32>
      %263 = vector.broadcast %262 : vector<4x1xf32> to vector<4x128xf32>
      %264 = arith.mulf %261, %263 : vector<4x128xf32>
      %265 = arith.addf %247, %264 : vector<4x128xf32>
      %266 = vector.extract_strided_slice %8 {offsets = [0, 14], sizes = [4, 1], strides = [1, 1]} : vector<4x16xf32> to vector<4x1xf32>
      %267 = vector.broadcast %266 : vector<4x1xf32> to vector<4x128xf32>
      %268 = arith.mulf %7, %267 : vector<4x128xf32>
      %269 = vector.extract_strided_slice %9 {offsets = [0, 14], sizes = [4, 1], strides = [1, 1]} : vector<4x16xf32> to vector<4x1xf32>
      %270 = vector.broadcast %269 : vector<4x1xf32> to vector<4x128xf32>
      %271 = arith.addf %268, %270 : vector<4x128xf32>
      %cst_58 = arith.constant 5.000000e-01 : f32
      %272 = vector.broadcast %cst_58 : f32 to vector<4x128xf32>
      %273 = arith.mulf %272, %271 : vector<4x128xf32>
      %274 = math.tanh %273 : vector<4x128xf32>
      %cst_59 = arith.constant 1.000000e+00 : f32
      %275 = vector.broadcast %cst_59 : f32 to vector<4x128xf32>
      %276 = arith.addf %274, %275 : vector<4x128xf32>
      %cst_60 = arith.constant 5.000000e-01 : f32
      %277 = vector.broadcast %cst_60 : f32 to vector<4x128xf32>
      %278 = arith.mulf %277, %276 : vector<4x128xf32>
      %279 = arith.mulf %271, %278 : vector<4x128xf32>
      %280 = vector.extract_strided_slice %10 {offsets = [0, 14], sizes = [4, 1], strides = [1, 1]} : vector<4x16xf32> to vector<4x1xf32>
      %281 = vector.broadcast %280 : vector<4x1xf32> to vector<4x128xf32>
      %282 = arith.mulf %279, %281 : vector<4x128xf32>
      %283 = arith.addf %265, %282 : vector<4x128xf32>
      %284 = vector.extract_strided_slice %8 {offsets = [0, 15], sizes = [4, 1], strides = [1, 1]} : vector<4x16xf32> to vector<4x1xf32>
      %285 = vector.broadcast %284 : vector<4x1xf32> to vector<4x128xf32>
      %286 = arith.mulf %7, %285 : vector<4x128xf32>
      %287 = vector.extract_strided_slice %9 {offsets = [0, 15], sizes = [4, 1], strides = [1, 1]} : vector<4x16xf32> to vector<4x1xf32>
      %288 = vector.broadcast %287 : vector<4x1xf32> to vector<4x128xf32>
      %289 = arith.addf %286, %288 : vector<4x128xf32>
      %cst_61 = arith.constant 5.000000e-01 : f32
      %290 = vector.broadcast %cst_61 : f32 to vector<4x128xf32>
      %291 = arith.mulf %290, %289 : vector<4x128xf32>
      %292 = math.tanh %291 : vector<4x128xf32>
      %cst_62 = arith.constant 1.000000e+00 : f32
      %293 = vector.broadcast %cst_62 : f32 to vector<4x128xf32>
      %294 = arith.addf %292, %293 : vector<4x128xf32>
      %cst_63 = arith.constant 5.000000e-01 : f32
      %295 = vector.broadcast %cst_63 : f32 to vector<4x128xf32>
      %296 = arith.mulf %295, %294 : vector<4x128xf32>
      %297 = arith.mulf %289, %296 : vector<4x128xf32>
      %298 = vector.extract_strided_slice %10 {offsets = [0, 15], sizes = [4, 1], strides = [1, 1]} : vector<4x16xf32> to vector<4x1xf32>
      %299 = vector.broadcast %298 : vector<4x1xf32> to vector<4x128xf32>
      %300 = arith.mulf %297, %299 : vector<4x128xf32>
      %301 = arith.addf %283, %300 : vector<4x128xf32>
      %c0_64 = arith.constant 0 : index
      %c0_65 = arith.constant 0 : index
      %302 = vector.load %arg9[%c0_64, %c0_65] : memref<4x128xf32, #tpu.memory_space<vmem>>, vector<4x128xf32>
      tpu.vector_store %arg9[%c0_64, %c0_65], %301 {strides = array<i32>} : memref<4x128xf32, #tpu.memory_space<vmem>>, vector<4x128xf32>,
    } else {
    }
    %c0 = arith.constant 0 : index
    %c0_1 = arith.constant 0 : index
    %3 = vector.load %arg7[%c0, %c0_1] : memref<8x4xf32, #tpu.memory_space<vmem>>, vector<8x4xf32>
    %c0_2 = arith.constant 0 : index
    %c0_3 = arith.constant 0 : index
    %4 = vector.load %arg9[%c0_2, %c0_3] : memref<4x128xf32, #tpu.memory_space<vmem>>, vector<4x128xf32>
    %cst = arith.constant dense<0.000000e+00> : vector<8x128xf32>
    %5 = tpu.matmul %3, %4, %cst {dimension_numbers = #tpu.dot_dimension_numbers<[1], [0], [0], [1], [0, 0, 1, 1], [], []>} : vector<8x4xf32>, vector<4x128xf32>, vector<8x128xf32> -> vector<8x128xf32>
    %c0_4 = arith.constant 0 : index
    %c0_5 = arith.constant 0 : index
    %6 = vector.load %arg8[%c0_4, %c0_5] : memref<8x128xf32, #tpu.memory_space<vmem>>, vector<8x128xf32>
    tpu.vector_store %arg8[%c0_4, %c0_5], %5 {strides = array<i32>} : memref<8x128xf32, #tpu.memory_space<vmem>>, vector<8x128xf32>,
    return
  }
  func.func @transform_0(%arg0: i32, %arg1: i32) -> (i32, i32) {
    %c0_i32 = arith.constant 0 : i32
    %c0_i32_0 = arith.constant 0 : i32
    return %c0_i32, %arg0 : i32, i32
  }
  func.func @transform_1(%arg0: i32, %arg1: i32) -> (i32, i32) {
    %c0_i32 = arith.constant 0 : i32
    %c0_i32_0 = arith.constant 0 : i32
    %c0_i32_1 = arith.constant 0 : i32
    return %c0_i32, %c0_i32_0 : i32, i32
  }
  func.func @transform_2(%arg0: i32, %arg1: i32) -> (i32, i32) {
    %c0_i32 = arith.constant 0 : i32
    %c0_i32_0 = arith.constant 0 : i32
    %c0_i32_1 = arith.constant 0 : i32
    return %c0_i32, %c0_i32_0 : i32, i32
  }
  func.func @transform_3(%arg0: i32, %arg1: i32) -> (i32, i32) {
    %c0_i32 = arith.constant 0 : i32
    %c0_i32_0 = arith.constant 0 : i32
    %c0_i32_1 = arith.constant 0 : i32
    return %c0_i32, %c0_i32_0 : i32, i32
  }
  func.func @transform_4(%arg0: i32, %arg1: i32) -> (i32, i32) {
    %c0_i32 = arith.constant 0 : i32
    %c0_i32_0 = arith.constant 0 : i32
    %c0_i32_1 = arith.constant 0 : i32
    return %c0_i32, %c0_i32_0 : i32, i32
  }
  func.func @transform_5(%arg0: i32, %arg1: i32) -> (i32, i32) {
    %c0_i32 = arith.constant 0 : i32
    %c0_i32_0 = arith.constant 0 : i32
    return %arg1, %c0_i32 : i32, i32
  }
  func.func @transform_6(%arg0: i32, %arg1: i32) -> (i32, i32) {
    %c0_i32 = arith.constant 0 : i32
    return %arg1, %arg0 : i32, i32
  }
}

</mosaic_0001>

<llo_original>
// kernel: tpu_custom_call.1
$region0: #{tpu_custom_call.1}
  #allocation0 [shape = 'u32[]', space=smem, size = 0x4, offset = 0x4, fixed_abs, tag = 'smem constant byte address 0x4 - core index']
  #allocation1 [shape = 'u32[144,128]{1,0:T(1,128)}', space=vmem, size = 0x12000, scoped, tag = 'internal scratch']
  #allocation2 [shape = 'f32[4,128]{1,0:T(4,128)}', space=vmem, size = 0x800, scoped, tag = 'scratch operand']
  %s0 = inlined_call_operand.vmem [shape: f32[4,128], index: 0, kind: input, shape index: {}]
  %s1 = inlined_call_operand.vmem [shape: f32[4,16], index: 1, kind: input, shape index: {}]
  %s2 = inlined_call_operand.vmem [shape: f32[4,16], index: 2, kind: input, shape index: {}]
  %s3 = inlined_call_operand.vmem [shape: f32[4,16], index: 3, kind: input, shape index: {}]
  %s4 = inlined_call_operand.vmem [shape: f32[4,1], index: 4, kind: input, shape index: {}]
  %s5 = inlined_call_operand.vmem [shape: f32[8,4], index: 5, kind: input, shape index: {}]
  %s6 = inlined_call_operand.hbm [shape: f32[8,128], index: 6, kind: output, shape index: {}]
  %s7 = sld [smem:[#allocation0]]
  $region38: #{tpu_custom_call.1} parent=0
    _
  %s9 = ssub.s32 1, %s7
  %s10 = scalar_select 0, %s9, %s7
  $region1: #{tpu_custom_call.1} parent=0
    #allocation3 [shape = 'u8[4096]{0}', space=vmem, size = 0x1000, scoped, tag = 'output window, operand 0, single buffered']
    #allocation4 [shape = 's32[1]{0}', space=sflag, size = 0x4, scoped, tag = 'scoped memory for tpu_custom_call.1']
    %11 = vsyncpa [#allocation4], 0
    // Predicated region
    $region2: #{tpu_custom_call.1} parent=1 // pred_check
      _
    $region3: #{tpu_custom_call.1} parent=1 // pred_check_branch
      %13 = sbr.rel (0) target = $region5
    $region4: #{tpu_custom_call.1} parent=1 // pred_region
      _
    $region5: #{tpu_custom_call.1} parent=1 // pred_fallthru
      _
    // Predicated region
    $region6: #{tpu_custom_call.1} parent=1 // pred_check
      _
    $region7: #{tpu_custom_call.1} parent=1 // pred_check_branch
      %15 = sbr.rel (0) target = $region9
    $region8: #{tpu_custom_call.1} parent=1 // pred_region
      _
    $region9: #{tpu_custom_call.1} parent=1 // pred_fallthru
      _
    // Predicated region
    $region10: #{tpu_custom_call.1} parent=1 // pred_check
      _
    $region11: #{tpu_custom_call.1} parent=1 // pred_check_branch
      %17 = sbr.rel (0) target = $region13
    $region12: #{tpu_custom_call.1} parent=1 // pred_region
      _
    $region13: #{tpu_custom_call.1} parent=1 // pred_fallthru
      _
    // Predicated region
    $region14: #{tpu_custom_call.1} parent=1 // pred_check
      _
    $region15: #{tpu_custom_call.1} parent=1 // pred_check_branch
      %19 = sbr.rel (0) target = $region17
    $region16: #{tpu_custom_call.1} parent=1 // pred_region
      _
    $region17: #{tpu_custom_call.1} parent=1 // pred_fallthru
      _
    // Predicated region
    $region18: #{tpu_custom_call.1} parent=1 // pred_check
      _
    $region19: #{tpu_custom_call.1} parent=1 // pred_check_branch
      %21 = sbr.rel (0) target = $region21
    $region20: #{tpu_custom_call.1} parent=1 // pred_region
      _
    $region21: #{tpu_custom_call.1} parent=1 // pred_fallthru
      _
    // Predicated region
    $region22: #{tpu_custom_call.1} parent=1 // pred_check
      _
    $region23: #{tpu_custom_call.1} parent=1 // pred_check_branch
      %23 = sbr.rel (0) target = $region25
    $region24: #{tpu_custom_call.1} parent=1 // pred_region
      _
    $region25: #{tpu_custom_call.1} parent=1 // pred_fallthru
      _
    %p24 = scmp.eq.s32.totalorder 0, 0
    // Predicated region
    $region26: #{tpu_custom_call.1} parent=1 // pred_check
      %p25 = pneg %p24
    $region27: #{tpu_custom_call.1} parent=1 // pred_check_branch
      %27 = sbr.rel (%p25) target = $region29
    $region28: #{tpu_custom_call.1} parent=1 // pred_region
      %v28 = vld [vmem:[%s0] sm:$0xf]
      %v29 = vld [vmem:[%s1] sm:$0xf]
      %v30 = vld [vmem:[%s2] sm:$0xf]
      %v31 = vld [vmem:[%s3] sm:$0xf]
      %v32 = vld [vmem:[%s4] sm:$0xf]
      %34 = vset.pattern.permute.xlu0 0
      %35 = vperm.xlu0 %34, %v32
      %v36 = vpop.permute.xlu0 %35
      %39 = vset.pattern.permute.xlu0 0
      %40 = vperm.xlu0 %39, %v29
      %v41 = vpop.permute.xlu0 %40
      %v43 = vmul.f32 %v28, %v41
      %45 = vset.pattern.permute.xlu0 0
      %46 = vperm.xlu0 %45, %v30
      %v47 = vpop.permute.xlu0 %46
      %v49 = vadd.f32 %v43, %v47
      %v50 = vmul.f32 %v49, 0.5
      %v51 = vtanh.pop %v50
      %v52 = vadd.f32 %v51, 1.0
      %v53 = vmul.f32 %v52, 0.5
      %v54 = vmul.f32 %v49, %v53
      %56 = vset.pattern.permute.xlu0 0
      %57 = vperm.xlu0 %56, %v31
      %v58 = vpop.permute.xlu0 %57
      %v60 = vmul.f32 %v54, %v58
      %v61 = vadd.f32 %v36, %v60
      %62 = vset.pattern.permute.xlu0 1
      %63 = vperm.xlu0 %62, %v29
      %v64 = vpop.permute.xlu0 %63
      %v66 = vmul.f32 %v28, %v64
      %67 = vset.pattern.permute.xlu0 1
      %68 = vperm.xlu0 %67, %v30
      %v69 = vpop.permute.xlu0 %68
      %v71 = vadd.f32 %v66, %v69
      %v72 = vmul.f32 %v71, 0.5
      %v73 = vtanh.pop %v72
      %v74 = vadd.f32 %v73, 1.0
      %v75 = vmul.f32 %v74, 0.5
      %v76 = vmul.f32 %v71, %v75
      %77 = vset.pattern.permute.xlu0 1
      %78 = vperm.xlu0 %77, %v31
      %v79 = vpop.permute.xlu0 %78
      %v81 = vmul.f32 %v76, %v79
      %v82 = vadd.f32 %v61, %v81
      %83 = vset.pattern.permute.xlu0 2
      %84 = vperm.xlu0 %83, %v29
      %v85 = vpop.permute.xlu0 %84
      %v87 = vmul.f32 %v28, %v85
      %88 = vset.pattern.permute.xlu0 2
      %89 = vperm.xlu0 %88, %v30
      %v90 = vpop.permute.xlu0 %89
      %v92 = vadd.f32 %v87, %v90
      %v93 = vmul.f32 %v92, 0.5
      %v94 = vtanh.pop %v93
      %v95 = vadd.f32 %v94, 1.0
      %v96 = vmul.f32 %v95, 0.5
      %v97 = vmul.f32 %v92, %v96
      %98 = vset.pattern.permute.xlu0 2
      %99 = vperm.xlu0 %98, %v31
      %v100 = vpop.permute.xlu0 %99
      %v102 = vmul.f32 %v97, %v100
      %v103 = vadd.f32 %v82, %v102
      %104 = vset.pattern.permute.xlu0 3
      %105 = vperm.xlu0 %104, %v29
      %v106 = vpop.permute.xlu0 %105
      %v108 = vmul.f32 %v28, %v106
      %109 = vset.pattern.permute.xlu0 3
      %110 = vperm.xlu0 %109, %v30
      %v111 = vpop.permute.xlu0 %110
      %v113 = vadd.f32 %v108, %v111
      %v114 = vmul.f32 %v113, 0.5
      %v115 = vtanh.pop %v114
      %v116 = vadd.f32 %v115, 1.0
      %v117 = vmul.f32 %v116, 0.5
      %v118 = vmul.f32 %v113, %v117
      %119 = vset.pattern.permute.xlu0 3
      %120 = vperm.xlu0 %119, %v31
      %v121 = vpop.permute.xlu0 %120
      %v123 = vmul.f32 %v118, %v121
      %v124 = vadd.f32 %v103, %v123
      %125 = vset.pattern.permute.xlu0 4
      %126 = vperm.xlu0 %125, %v29
      %v127 = vpop.permute.xlu0 %126
      %v129 = vmul.f32 %v28, %v127
      %130 = vset.pattern.permute.xlu0 4
      %131 = vperm.xlu0 %130, %v30
      %v132 = vpop.permute.xlu0 %131
      %v134 = vadd.f32 %v129, %v132
      %v135 = vmul.f32 %v134, 0.5
      %v136 = vtanh.pop %v135
      %v137 = vadd.f32 %v136, 1.0
      %v138 = vmul.f32 %v137, 0.5
      %v139 = vmul.f32 %v134, %v138
      %140 = vset.pattern.permute.xlu0 4
      %141 = vperm.xlu0 %140, %v31
      %v142 = vpop.permute.xlu0 %141
      %v144 = vmul.f32 %v139, %v142
      %v145 = vadd.f32 %v124, %v144
      %146 = vset.pattern.permute.xlu0 5
      %147 = vperm.xlu0 %146, %v29
      %v148 = vpop.permute.xlu0 %147
      %v150 = vmul.f32 %v28, %v148
      %151 = vset.pattern.permute.xlu0 5
      %152 = vperm.xlu0 %151, %v30
      %v153 = vpop.permute.xlu0 %152
      %v155 = vadd.f32 %v150, %v153
      %v156 = vmul.f32 %v155, 0.5
      %v157 = vtanh.pop %v156
      %v158 = vadd.f32 %v157, 1.0
      %v159 = vmul.f32 %v158, 0.5
      %v160 = vmul.f32 %v155, %v159
      %161 = vset.pattern.permute.xlu0 5
      %162 = vperm.xlu0 %161, %v31
      %v163 = vpop.permute.xlu0 %162
      %v165 = vmul.f32 %v160, %v163
      %v166 = vadd.f32 %v145, %v165
      %167 = vset.pattern.permute.xlu0 6
      %168 = vperm.xlu0 %167, %v29
      %v169 = vpop.permute.xlu0 %168
      %v171 = vmul.f32 %v28, %v169
      %172 = vset.pattern.permute.xlu0 6
      %173 = vperm.xlu0 %172, %v30
      %v174 = vpop.permute.xlu0 %173
      %v176 = vadd.f32 %v171, %v174
      %v177 = vmul.f32 %v176, 0.5
      %v178 = vtanh.pop %v177
      %v179 = vadd.f32 %v178, 1.0
      %v180 = vmul.f32 %v179, 0.5
      %v181 = vmul.f32 %v176, %v180
      %182 = vset.pattern.permute.xlu0 6
      %183 = vperm.xlu0 %182, %v31
      %v184 = vpop.permute.xlu0 %183
      %v186 = vmul.f32 %v181, %v184
      %v187 = vadd.f32 %v166, %v186
      %188 = vset.pattern.permute.xlu0 7
      %189 = vperm.xlu0 %188, %v29
      %v190 = vpop.permute.xlu0 %189
      %v192 = vmul.f32 %v28, %v190
      %193 = vset.pattern.permute.xlu0 7
      %194 = vperm.xlu0 %193, %v30
      %v195 = vpop.permute.xlu0 %194
      %v197 = vadd.f32 %v192, %v195
      %v198 = vmul.f32 %v197, 0.5
      %v199 = vtanh.pop %v198
      %v200 = vadd.f32 %v199, 1.0
      %v201 = vmul.f32 %v200, 0.5
      %v202 = vmul.f32 %v197, %v201
      %203 = vset.pattern.permute.xlu0 7
      %204 = vperm.xlu0 %203, %v31
      %v205 = vpop.permute.xlu0 %204
      %v207 = vmul.f32 %v202, %v205
      %v208 = vadd.f32 %v187, %v207
      %209 = vset.pattern.permute.xlu0 8
      %210 = vperm.xlu0 %209, %v29
      %v211 = vpop.permute.xlu0 %210
      %v213 = vmul.f32 %v28, %v211
      %214 = vset.pattern.permute.xlu0 8
      %215 = vperm.xlu0 %214, %v30
      %v216 = vpop.permute.xlu0 %215
      %v218 = vadd.f32 %v213, %v216
      %v219 = vmul.f32 %v218, 0.5
      %v220 = vtanh.pop %v219
      %v221 = vadd.f32 %v220, 1.0
      %v222 = vmul.f32 %v221, 0.5
      %v223 = vmul.f32 %v218, %v222
      %224 = vset.pattern.permute.xlu0 8
      %225 = vperm.xlu0 %224, %v31
      %v226 = vpop.permute.xlu0 %225
      %v228 = vmul.f32 %v223, %v226
      %v229 = vadd.f32 %v208, %v228
      %230 = vset.pattern.permute.xlu0 9
      %231 = vperm.xlu0 %230, %v29
      %v232 = vpop.permute.xlu0 %231
      %v234 = vmul.f32 %v28, %v232
      %235 = vset.pattern.permute.xlu0 9
      %236 = vperm.xlu0 %235, %v30
      %v237 = vpop.permute.xlu0 %236
      %v239 = vadd.f32 %v234, %v237
      %v240 = vmul.f32 %v239, 0.5
      %v241 = vtanh.pop %v240
      %v242 = vadd.f32 %v241, 1.0
      %v243 = vmul.f32 %v242, 0.5
      %v244 = vmul.f32 %v239, %v243
      %245 = vset.pattern.permute.xlu0 9
      %246 = vperm.xlu0 %245, %v31
      %v247 = vpop.permute.xlu0 %246
      %v249 = vmul.f32 %v244, %v247
      %v250 = vadd.f32 %v229, %v249
      %251 = vset.pattern.permute.xlu0 10
      %252 = vperm.xlu0 %251, %v29
      %v253 = vpop.permute.xlu0 %252
      %v255 = vmul.f32 %v28, %v253
      %256 = vset.pattern.permute.xlu0 10
      %257 = vperm.xlu0 %256, %v30
      %v258 = vpop.permute.xlu0 %257
      %v260 = vadd.f32 %v255, %v258
      %v261 = vmul.f32 %v260, 0.5
      %v262 = vtanh.pop %v261
      %v263 = vadd.f32 %v262, 1.0
      %v264 = vmul.f32 %v263, 0.5
      %v265 = vmul.f32 %v260, %v264
      %266 = vset.pattern.permute.xlu0 10
      %267 = vperm.xlu0 %266, %v31
      %v268 = vpop.permute.xlu0 %267
      %v270 = vmul.f32 %v265, %v268
      %v271 = vadd.f32 %v250, %v270
      %272 = vset.pattern.permute.xlu0 11
      %273 = vperm.xlu0 %272, %v29
      %v274 = vpop.permute.xlu0 %273
      %v276 = vmul.f32 %v28, %v274
      %277 = vset.pattern.permute.xlu0 11
      %278 = vperm.xlu0 %277, %v30
      %v279 = vpop.permute.xlu0 %278
      %v281 = vadd.f32 %v276, %v279
      %v282 = vmul.f32 %v281, 0.5
      %v283 = vtanh.pop %v282
      %v284 = vadd.f32 %v283, 1.0
      %v285 = vmul.f32 %v284, 0.5
      %v286 = vmul.f32 %v281, %v285
      %287 = vset.pattern.permute.xlu0 11
      %288 = vperm.xlu0 %287, %v31
      %v289 = vpop.permute.xlu0 %288
      %v291 = vmul.f32 %v286, %v289
      %v292 = vadd.f32 %v271, %v291
      %293 = vset.pattern.permute.xlu0 12
      %294 = vperm.xlu0 %293, %v29
      %v295 = vpop.permute.xlu0 %294
      %v297 = vmul.f32 %v28, %v295
      %298 = vset.pattern.permute.xlu0 12
      %299 = vperm.xlu0 %298, %v30
      %v300 = vpop.permute.xlu0 %299
      %v302 = vadd.f32 %v297, %v300
      %v303 = vmul.f32 %v302, 0.5
      %v304 = vtanh.pop %v303
      %v305 = vadd.f32 %v304, 1.0
      %v306 = vmul.f32 %v305, 0.5
      %v307 = vmul.f32 %v302, %v306
      %308 = vset.pattern.permute.xlu0 12
      %309 = vperm.xlu0 %308, %v31
      %v310 = vpop.permute.xlu0 %309
      %v312 = vmul.f32 %v307, %v310
      %v313 = vadd.f32 %v292, %v312
      %314 = vset.pattern.permute.xlu0 13
      %315 = vperm.xlu0 %314, %v29
      %v316 = vpop.permute.xlu0 %315
      %v318 = vmul.f32 %v28, %v316
      %319 = vset.pattern.permute.xlu0 13
      %320 = vperm.xlu0 %319, %v30
      %v321 = vpop.permute.xlu0 %320
      %v323 = vadd.f32 %v318, %v321
      %v324 = vmul.f32 %v323, 0.5
      %v325 = vtanh.pop %v324
      %v326 = vadd.f32 %v325, 1.0
      %v327 = vmul.f32 %v326, 0.5
      %v328 = vmul.f32 %v323, %v327
      %329 = vset.pattern.permute.xlu0 13
      %330 = vperm.xlu0 %329, %v31
      %v331 = vpop.permute.xlu0 %330
      %v333 = vmul.f32 %v328, %v331
      %v334 = vadd.f32 %v313, %v333
      %335 = vset.pattern.permute.xlu0 14
      %336 = vperm.xlu0 %335, %v29
      %v337 = vpop.permute.xlu0 %336
      %v339 = vmul.f32 %v28, %v337
      %340 = vset.pattern.permute.xlu0 14
      %341 = vperm.xlu0 %340, %v30
      %v342 = vpop.permute.xlu0 %341
      %v344 = vadd.f32 %v339, %v342
      %v345 = vmul.f32 %v344, 0.5
      %v346 = vtanh.pop %v345
      %v347 = vadd.f32 %v346, 1.0
      %v348 = vmul.f32 %v347, 0.5
      %v349 = vmul.f32 %v344, %v348
      %350 = vset.pattern.permute.xlu0 14
      %351 = vperm.xlu0 %350, %v31
      %v352 = vpop.permute.xlu0 %351
      %v354 = vmul.f32 %v349, %v352
      %v355 = vadd.f32 %v334, %v354
      %356 = vset.pattern.permute.xlu0 15
      %357 = vperm.xlu0 %356, %v29
      %v358 = vpop.permute.xlu0 %357
      %v360 = vmul.f32 %v28, %v358
      %361 = vset.pattern.permute.xlu0 15
      %362 = vperm.xlu0 %361, %v30
      %v363 = vpop.permute.xlu0 %362
      %v365 = vadd.f32 %v360, %v363
      %v366 = vmul.f32 %v365, 0.5
      %v367 = vtanh.pop %v366
      %v368 = vadd.f32 %v367, 1.0
      %v369 = vmul.f32 %v368, 0.5
      %v370 = vmul.f32 %v365, %v369
      %371 = vset.pattern.permute.xlu0 15
      %372 = vperm.xlu0 %371, %v31
      %v373 = vpop.permute.xlu0 %372
      %v375 = vmul.f32 %v370, %v373
      %v376 = vadd.f32 %v355, %v375
      %377 = vst [vmem:[#allocation2] sm:$0xf] %v376
    $region29: #{tpu_custom_call.1} parent=1 // pred_fallthru
      _
    %v378 = vld [vmem:[%s5] sm:$0xff]
    %v379 = vld [vmem:[#allocation2] sm:$0xf]
    %vm380 = vcmask 31744
    %v382 = vsel %vm380, %v378, 0
    %vm384 = vcmask 1043456
    %v386 = vsel %vm384, %v379, 0
    %388 = vmatprep.subr.mxu0 0.0
    %389 = vmatpush1.msra.mxu0 %v386
    %390 = vmatprep.subr.mxu0 0.0
    %391 = vmatpush1.msra.mxu0 0.0
    %392 = vmatprep.subr.mxu0 0.0
    %393 = vmatpush1.msra.mxu0 0.0
    %394 = vmatprep.subr.mxu0 0.0
    %395 = vmatpush1.msra.mxu0 0.0
    %396 = vmatprep.subr.mxu0 0.0
    %397 = vmatpush1.msra.mxu0 0.0
    %398 = vmatprep.subr.mxu0 0.0
    %399 = vmatpush1.msra.mxu0 0.0
    %400 = vmatprep.subr.mxu0 0.0
    %401 = vmatpush1.msra.mxu0 0.0
    %402 = vmatprep.subr.mxu0 0.0
    %403 = vmatpush1.msra.mxu0 0.0
    %404 = vmatprep.subr.mxu0 0.0
    %405 = vmatpush1.msra.mxu0 0.0
    %406 = vmatprep.subr.mxu0 0.0
    %407 = vmatpush1.msra.mxu0 0.0
    %408 = vmatprep.subr.mxu0 0.0
    %409 = vmatpush1.msra.mxu0 0.0
    %410 = vmatprep.subr.mxu0 0.0
    %411 = vmatpush1.msra.mxu0 0.0
    %412 = vmatprep.subr.mxu0 0.0
    %413 = vmatpush1.msra.mxu0 0.0
    %414 = vmatprep.subr.mxu0 0.0
    %415 = vmatpush1.msra.mxu0 0.0
    %416 = vmatprep.subr.mxu0 0.0
    %417 = vmatpush1.msra.mxu0 0.0
    %418 = vmatprep.subr.mxu0 0.0
    %419 = vmatpush1.msra.mxu0 0.0
    %420 = vmatprep.subr.mxu0 0.0
    %421 = vmatpush1.msra.mxu0 0.0
    %422 = vmatprep.subr.mxu0 0.0
    %423 = vmatpush1.msra.mxu0 0.0
    %424 = vmatprep.subr.mxu0 0.0
    %425 = vmatpush1.msra.mxu0 0.0
    %426 = vmatprep.subr.mxu0 0.0
    %427 = vmatpush1.msra.mxu0 0.0
    %428 = vmatprep.subr.mxu0 0.0
    %429 = vmatpush1.msra.mxu0 0.0
    %430 = vmatprep.subr.mxu0 0.0
    %431 = vmatpush1.msra.mxu0 0.0
    %432 = vmatprep.subr.mxu0 0.0
    %433 = vmatpush1.msra.mxu0 0.0
    %434 = vmatprep.subr.mxu0 0.0
    %435 = vmatpush1.msra.mxu0 0.0
    %436 = vmatprep.subr.mxu0 0.0
    %437 = vmatpush1.msra.mxu0 0.0
    %438 = vmatprep.subr.mxu0 0.0
    %439 = vmatpush1.msra.mxu0 0.0
    %440 = vmatprep.subr.mxu0 0.0
    %441 = vmatpush1.msra.mxu0 0.0
    %442 = vmatprep.subr.mxu0 0.0
    %443 = vmatpush1.msra.mxu0 0.0
    %444 = vmatprep.subr.mxu0 0.0
    %445 = vmatpush1.msra.mxu0 0.0
    %446 = vmatprep.subr.mxu0 0.0
    %447 = vmatpush1.msra.mxu0 0.0
    %448 = vmatprep.subr.mxu0 0.0
    %449 = vmatpush1.msra.mxu0 0.0
    %450 = vmatprep.subr.mxu0 0.0
    %451 = vmatpush1.msra.mxu0 0.0
    %452 = vmatprep.mubr.f32.mxu0 0.0
    %453 = vmatmul.mubr.f32.gmra.mrb[0].mxu0 %v382
    %v454 = vpop.f32.mrb[0].mxu0
    %v455 = vadd.f32 0.0, %v454
    %v456 = vpop.f32.mrb[0].mxu0
    %457 = vdwg.mxu0
    %458 = vst [vmem:[#allocation3] sm:$0xff] %v455
    // Predicated region
    $region30: #{tpu_custom_call.1} parent=1 // pred_check
      _
    $region31: #{tpu_custom_call.1} parent=1 // pred_check_branch
      %460 = sbr.rel (0) target = $region33
    $region32: #{tpu_custom_call.1} parent=1 // pred_region
      %s462 = ssub.s32 128, 128
      %463 = vsyncadd [#allocation4], %s462
      %s465 = sshll.u32 [#allocation3], 4
      %s466 = int_to_ptr.vmem [resolvable:$true] %s465
      %468 = dma.vmem_to_hbm [thread:$0]  %s466, 128, %s6, [#allocation4]
    $region33: #{tpu_custom_call.1} parent=1 // pred_fallthru
      _
    // Predicated region
    $region34: #{tpu_custom_call.1} parent=1 // pred_check
      _
    $region35: #{tpu_custom_call.1} parent=1 // pred_check_branch
      %470 = sbr.rel (0) target = $region37
    $region36: #{tpu_custom_call.1} parent=1 // pred_region
      %471 = dma.done [#allocation4], 128
    $region37: #{tpu_custom_call.1} parent=1 // pred_fallthru
      _
    %472 = vsyncpa [#allocation4], 1

// kernel: tpu_custom_call.1
$region0: #{tpu_custom_call.1}
  #allocation0 [shape = 'u32[]', space=smem, size = 0x4, offset = 0x4, fixed_abs, tag = 'smem constant byte address 0x4 - core index']
  #allocation1 [shape = 'u32[144,128]{1,0:T(1,128)}', space=vmem, size = 0x12000, scoped, tag = 'internal scratch']
  #allocation2 [shape = 'f32[4,128]{1,0:T(4,128)}', space=vmem, size = 0x800, scoped, tag = 'scratch operand']
  %s0 = inlined_call_operand.vmem [shape: f32[4,128], index: 0, kind: input, shape index: {}]
  %s1 = inlined_call_operand.vmem [shape: f32[4,16], index: 1, kind: input, shape index: {}]
  %s2 = inlined_call_operand.vmem [shape: f32[4,16], index: 2, kind: input, shape index: {}]
  %s3 = inlined_call_operand.vmem [shape: f32[4,16], index: 3, kind: input, shape index: {}]
  %s4 = inlined_call_operand.vmem [shape: f32[4,1], index: 4, kind: input, shape index: {}]
  %s5 = inlined_call_operand.vmem [shape: f32[8,4], index: 5, kind: input, shape index: {}]
  %s6 = inlined_call_operand.hbm [shape: f32[8,128], index: 6, kind: output, shape index: {}]
  %s7 = sld [smem:[#allocation0]]
  $region38: #{tpu_custom_call.1} parent=0
    _
  %s9 = ssub.s32 1, %s7
  %s10 = scalar_select 0, %s9, %s7
  $region1: #{tpu_custom_call.1} parent=0
    #allocation3 [shape = 'u8[4096]{0}', space=vmem, size = 0x1000, scoped, tag = 'output window, operand 0, single buffered']
    #allocation4 [shape = 's32[1]{0}', space=sflag, size = 0x4, scoped, tag = 'scoped memory for tpu_custom_call.1']
    %11 = vsyncpa [#allocation4], 0
    // Predicated region
    $region2: #{tpu_custom_call.1} parent=1 // pred_check
      _
    $region3: #{tpu_custom_call.1} parent=1 // pred_check_branch
      %13 = sbr.rel (0) target = $region5
    $region4: #{tpu_custom_call.1} parent=1 // pred_region
      _
    $region5: #{tpu_custom_call.1} parent=1 // pred_fallthru
      _
    // Predicated region
    $region6: #{tpu_custom_call.1} parent=1 // pred_check
      _
    $region7: #{tpu_custom_call.1} parent=1 // pred_check_branch
      %15 = sbr.rel (0) target = $region9
    $region8: #{tpu_custom_call.1} parent=1 // pred_region
      _
    $region9: #{tpu_custom_call.1} parent=1 // pred_fallthru
      _
    // Predicated region
    $region10: #{tpu_custom_call.1} parent=1 // pred_check
      _
    $region11: #{tpu_custom_call.1} parent=1 // pred_check_branch
      %17 = sbr.rel (0) target = $region13
    $region12: #{tpu_custom_call.1} parent=1 // pred_region
      _
    $region13: #{tpu_custom_call.1} parent=1 // pred_fallthru
      _
    // Predicated region
    $region14: #{tpu_custom_call.1} parent=1 // pred_check
      _
    $region15: #{tpu_custom_call.1} parent=1 // pred_check_branch
      %19 = sbr.rel (0) target = $region17
    $region16: #{tpu_custom_call.1} parent=1 // pred_region
      _
    $region17: #{tpu_custom_call.1} parent=1 // pred_fallthru
      _
    // Predicated region
    $region18: #{tpu_custom_call.1} parent=1 // pred_check
      _
    $region19: #{tpu_custom_call.1} parent=1 // pred_check_branch
      %21 = sbr.rel (0) target = $region21
    $region20: #{tpu_custom_call.1} parent=1 // pred_region
      _
    $region21: #{tpu_custom_call.1} parent=1 // pred_fallthru
      _
    // Predicated region
    $region22: #{tpu_custom_call.1} parent=1 // pred_check
      _
    $region23: #{tpu_custom_call.1} parent=1 // pred_check_branch
      %23 = sbr.rel (0) target = $region25
    $region24: #{tpu_custom_call.1} parent=1 // pred_region
      _
    $region25: #{tpu_custom_call.1} parent=1 // pred_fallthru
      _
    %p24 = scmp.eq.s32.totalorder 0, 0
    // Predicated region
    $region26: #{tpu_custom_call.1} parent=1 // pred_check
      %p25 = pneg %p24
    $region27: #{tpu_custom_call.1} parent=1 // pred_check_branch
      %27 = sbr.rel (%p25) target = $region29
    $region28: #{tpu_custom_call.1} parent=1 // pred_region
      %v28 = vld [vmem:[%s0] sm:$0xf]
      %v29 = vld [vmem:[%s1] sm:$0xf]
      %v30 = vld [vmem:[%s2] sm:$0xf]
      %v31 = vld [vmem:[%s3] sm:$0xf]
      %v32 = vld [vmem:[%s4] sm:$0xf]
      %34 = vset.pattern.permute.xlu0 0
      %35 = vperm.xlu0 %34, %v32
      %v36 = vpop.permute.xlu0 %35
      %39 = vset.pattern.permute.xlu0 0
      %40 = vperm.xlu0 %39, %v29
      %v41 = vpop.permute.xlu0 %40
      %v43 = vmul.f32 %v28, %v41
      %45 = vset.pattern.permute.xlu0 0
      %46 = vperm.xlu0 %45, %v30
      %v47 = vpop.permute.xlu0 %46
      %v49 = vadd.f32 %v43, %v47
      %v50 = vmul.f32 %v49, 0.5
      %v51 = vtanh.pop %v50
      %v52 = vadd.f32 %v51, 1.0
      %v53 = vmul.f32 %v52, 0.5
      %v54 = vmul.f32 %v49, %v53
      %56 = vset.pattern.permute.xlu0 0
      %57 = vperm.xlu0 %56, %v31
      %v58 = vpop.permute.xlu0 %57
      %v60 = vmul.f32 %v54, %v58
      %v61 = vadd.f32 %v36, %v60
      %62 = vset.pattern.permute.xlu0 1
      %63 = vperm.xlu0 %62, %v29
      %v64 = vpop.permute.xlu0 %63
      %v66 = vmul.f32 %v28, %v64
      %67 = vset.pattern.permute.xlu0 1
      %68 = vperm.xlu0 %67, %v30
      %v69 = vpop.permute.xlu0 %68
      %v71 = vadd.f32 %v66, %v69
      %v72 = vmul.f32 %v71, 0.5
      %v73 = vtanh.pop %v72
      %v74 = vadd.f32 %v73, 1.0
      %v75 = vmul.f32 %v74, 0.5
      %v76 = vmul.f32 %v71, %v75
      %77 = vset.pattern.permute.xlu0 1
      %78 = vperm.xlu0 %77, %v31
      %v79 = vpop.permute.xlu0 %78
      %v81 = vmul.f32 %v76, %v79
      %v82 = vadd.f32 %v61, %v81
      %83 = vset.pattern.permute.xlu0 2
      %84 = vperm.xlu0 %83, %v29
      %v85 = vpop.permute.xlu0 %84
      %v87 = vmul.f32 %v28, %v85
      %88 = vset.pattern.permute.xlu0 2
      %89 = vperm.xlu0 %88, %v30
      %v90 = vpop.permute.xlu0 %89
      %v92 = vadd.f32 %v87, %v90
      %v93 = vmul.f32 %v92, 0.5
      %v94 = vtanh.pop %v93
      %v95 = vadd.f32 %v94, 1.0
      %v96 = vmul.f32 %v95, 0.5
      %v97 = vmul.f32 %v92, %v96
      %98 = vset.pattern.permute.xlu0 2
      %99 = vperm.xlu0 %98, %v31
      %v100 = vpop.permute.xlu0 %99
      %v102 = vmul.f32 %v97, %v100
      %v103 = vadd.f32 %v82, %v102
      %104 = vset.pattern.permute.xlu0 3
      %105 = vperm.xlu0 %104, %v29
      %v106 = vpop.permute.xlu0 %105
      %v108 = vmul.f32 %v28, %v106
      %109 = vset.pattern.permute.xlu0 3
      %110 = vperm.xlu0 %109, %v30
      %v111 = vpop.permute.xlu0 %110
      %v113 = vadd.f32 %v108, %v111
      %v114 = vmul.f32 %v113, 0.5
      %v115 = vtanh.pop %v114
      %v116 = vadd.f32 %v115, 1.0
      %v117 = vmul.f32 %v116, 0.5
      %v118 = vmul.f32 %v113, %v117
      %119 = vset.pattern.permute.xlu0 3
      %120 = vperm.xlu0 %119, %v31
      %v121 = vpop.permute.xlu0 %120
      %v123 = vmul.f32 %v118, %v121
      %v124 = vadd.f32 %v103, %v123
      %125 = vset.pattern.permute.xlu0 4
      %126 = vperm.xlu0 %125, %v29
      %v127 = vpop.permute.xlu0 %126
      %v129 = vmul.f32 %v28, %v127
      %130 = vset.pattern.permute.xlu0 4
      %131 = vperm.xlu0 %130, %v30
      %v132 = vpop.permute.xlu0 %131
      %v134 = vadd.f32 %v129, %v132
      %v135 = vmul.f32 %v134, 0.5
      %v136 = vtanh.pop %v135
      %v137 = vadd.f32 %v136, 1.0
      %v138 = vmul.f32 %v137, 0.5
      %v139 = vmul.f32 %v134, %v138
      %140 = vset.pattern.permute.xlu0 4
      %141 = vperm.xlu0 %140, %v31
      %v142 = vpop.permute.xlu0 %141
      %v144 = vmul.f32 %v139, %v142
      %v145 = vadd.f32 %v124, %v144
      %146 = vset.pattern.permute.xlu0 5
      %147 = vperm.xlu0 %146, %v29
      %v148 = vpop.permute.xlu0 %147
      %v150 = vmul.f32 %v28, %v148
      %151 = vset.pattern.permute.xlu0 5
      %152 = vperm.xlu0 %151, %v30
      %v153 = vpop.permute.xlu0 %152
      %v155 = vadd.f32 %v150, %v153
      %v156 = vmul.f32 %v155, 0.5
      %v157 = vtanh.pop %v156
      %v158 = vadd.f32 %v157, 1.0
      %v159 = vmul.f32 %v158, 0.5
      %v160 = vmul.f32 %v155, %v159
      %161 = vset.pattern.permute.xlu0 5
      %162 = vperm.xlu0 %161, %v31
      %v163 = vpop.permute.xlu0 %162
      %v165 = vmul.f32 %v160, %v163
      %v166 = vadd.f32 %v145, %v165
      %167 = vset.pattern.permute.xlu0 6
      %168 = vperm.xlu0 %167, %v29
      %v169 = vpop.permute.xlu0 %168
      %v171 = vmul.f32 %v28, %v169
      %172 = vset.pattern.permute.xlu0 6
      %173 = vperm.xlu0 %172, %v30
      %v174 = vpop.permute.xlu0 %173
      %v176 = vadd.f32 %v171, %v174
      %v177 = vmul.f32 %v176, 0.5
      %v178 = vtanh.pop %v177
      %v179 = vadd.f32 %v178, 1.0
      %v180 = vmul.f32 %v179, 0.5
      %v181 = vmul.f32 %v176, %v180
      %182 = vset.pattern.permute.xlu0 6
      %183 = vperm.xlu0 %182, %v31
      %v184 = vpop.permute.xlu0 %183
      %v186 = vmul.f32 %v181, %v184
      %v187 = vadd.f32 %v166, %v186
      %188 = vset.pattern.permute.xlu0 7
      %189 = vperm.xlu0 %188, %v29
      %v190 = vpop.permute.xlu0 %189
      %v192 = vmul.f32 %v28, %v190
      %193 = vset.pattern.permute.xlu0 7
      %194 = vperm.xlu0 %193, %v30
      %v195 = vpop.permute.xlu0 %194
      %v197 = vadd.f32 %v192, %v195
      %v198 = vmul.f32 %v197, 0.5
      %v199 = vtanh.pop %v198
      %v200 = vadd.f32 %v199, 1.0
      %v201 = vmul.f32 %v200, 0.5
      %v202 = vmul.f32 %v197, %v201
      %203 = vset.pattern.permute.xlu0 7
      %204 = vperm.xlu0 %203, %v31
      %v205 = vpop.permute.xlu0 %204
      %v207 = vmul.f32 %v202, %v205
      %v208 = vadd.f32 %v187, %v207
      %209 = vset.pattern.permute.xlu0 8
      %210 = vperm.xlu0 %209, %v29
      %v211 = vpop.permute.xlu0 %210
      %v213 = vmul.f32 %v28, %v211
      %214 = vset.pattern.permute.xlu0 8
      %215 = vperm.xlu0 %214, %v30
      %v216 = vpop.permute.xlu0 %215
      %v218 = vadd.f32 %v213, %v216
      %v219 = vmul.f32 %v218, 0.5
      %v220 = vtanh.pop %v219
      %v221 = vadd.f32 %v220, 1.0
      %v222 = vmul.f32 %v221, 0.5
      %v223 = vmul.f32 %v218, %v222
      %224 = vset.pattern.permute.xlu0 8
      %225 = vperm.xlu0 %224, %v31
      %v226 = vpop.permute.xlu0 %225
      %v228 = vmul.f32 %v223, %v226
      %v229 = vadd.f32 %v208, %v228
      %230 = vset.pattern.permute.xlu0 9
      %231 = vperm.xlu0 %230, %v29
      %v232 = vpop.permute.xlu0 %231
      %v234 = vmul.f32 %v28, %v232
      %235 = vset.pattern.permute.xlu0 9
      %236 = vperm.xlu0 %235, %v30
      %v237 = vpop.permute.xlu0 %236
      %v239 = vadd.f32 %v234, %v237
      %v240 = vmul.f32 %v239, 0.5
      %v241 = vtanh.pop %v240
      %v242 = vadd.f32 %v241, 1.0
      %v243 = vmul.f32 %v242, 0.5
      %v244 = vmul.f32 %v239, %v243
      %245 = vset.pattern.permute.xlu0 9
      %246 = vperm.xlu0 %245, %v31
      %v247 = vpop.permute.xlu0 %246
      %v249 = vmul.f32 %v244, %v247
      %v250 = vadd.f32 %v229, %v249
      %251 = vset.pattern.permute.xlu0 10
      %252 = vperm.xlu0 %251, %v29
      %v253 = vpop.permute.xlu0 %252
      %v255 = vmul.f32 %v28, %v253
      %256 = vset.pattern.permute.xlu0 10
      %257 = vperm.xlu0 %256, %v30
      %v258 = vpop.permute.xlu0 %257
      %v260 = vadd.f32 %v255, %v258
      %v261 = vmul.f32 %v260, 0.5
      %v262 = vtanh.pop %v261
      %v263 = vadd.f32 %v262, 1.0
      %v264 = vmul.f32 %v263, 0.5
      %v265 = vmul.f32 %v260, %v264
      %266 = vset.pattern.permute.xlu0 10
      %267 = vperm.xlu0 %266, %v31
      %v268 = vpop.permute.xlu0 %267
      %v270 = vmul.f32 %v265, %v268
      %v271 = vadd.f32 %v250, %v270
      %272 = vset.pattern.permute.xlu0 11
      %273 = vperm.xlu0 %272, %v29
      %v274 = vpop.permute.xlu0 %273
      %v276 = vmul.f32 %v28, %v274
      %277 = vset.pattern.permute.xlu0 11
      %278 = vperm.xlu0 %277, %v30
      %v279 = vpop.permute.xlu0 %278
      %v281 = vadd.f32 %v276, %v279
      %v282 = vmul.f32 %v281, 0.5
      %v283 = vtanh.pop %v282
      %v284 = vadd.f32 %v283, 1.0
      %v285 = vmul.f32 %v284, 0.5
      %v286 = vmul.f32 %v281, %v285
      %287 = vset.pattern.permute.xlu0 11
      %288 = vperm.xlu0 %287, %v31
      %v289 = vpop.permute.xlu0 %288
      %v291 = vmul.f32 %v286, %v289
      %v292 = vadd.f32 %v271, %v291
      %293 = vset.pattern.permute.xlu0 12
      %294 = vperm.xlu0 %293, %v29
      %v295 = vpop.permute.xlu0 %294
      %v297 = vmul.f32 %v28, %v295
      %298 = vset.pattern.permute.xlu0 12
      %299 = vperm.xlu0 %298, %v30
      %v300 = vpop.permute.xlu0 %299
      %v302 = vadd.f32 %v297, %v300
      %v303 = vmul.f32 %v302, 0.5
      %v304 = vtanh.pop %v303
      %v305 = vadd.f32 %v304, 1.0
      %v306 = vmul.f32 %v305, 0.5
      %v307 = vmul.f32 %v302, %v306
      %308 = vset.pattern.permute.xlu0 12
      %309 = vperm.xlu0 %308, %v31
      %v310 = vpop.permute.xlu0 %309
      %v312 = vmul.f32 %v307, %v310
      %v313 = vadd.f32 %v292, %v312
      %314 = vset.pattern.permute.xlu0 13
      %315 = vperm.xlu0 %314, %v29
      %v316 = vpop.permute.xlu0 %315
      %v318 = vmul.f32 %v28, %v316
      %319 = vset.pattern.permute.xlu0 13
      %320 = vperm.xlu0 %319, %v30
      %v321 = vpop.permute.xlu0 %320
      %v323 = vadd.f32 %v318, %v321
      %v324 = vmul.f32 %v323, 0.5
      %v325 = vtanh.pop %v324
      %v326 = vadd.f32 %v325, 1.0
      %v327 = vmul.f32 %v326, 0.5
      %v328 = vmul.f32 %v323, %v327
      %329 = vset.pattern.permute.xlu0 13
      %330 = vperm.xlu0 %329, %v31
      %v331 = vpop.permute.xlu0 %330
      %v333 = vmul.f32 %v328, %v331
      %v334 = vadd.f32 %v313, %v333
      %335 = vset.pattern.permute.xlu0 14
      %336 = vperm.xlu0 %335, %v29
      %v337 = vpop.permute.xlu0 %336
      %v339 = vmul.f32 %v28, %v337
      %340 = vset.pattern.permute.xlu0 14
      %341 = vperm.xlu0 %340, %v30
      %v342 = vpop.permute.xlu0 %341
      %v344 = vadd.f32 %v339, %v342
      %v345 = vmul.f32 %v344, 0.5
      %v346 = vtanh.pop %v345
      %v347 = vadd.f32 %v346, 1.0
      %v348 = vmul.f32 %v347, 0.5
      %v349 = vmul.f32 %v344, %v348
      %350 = vset.pattern.permute.xlu0 14
      %351 = vperm.xlu0 %350, %v31
      %v352 = vpop.permute.xlu0 %351
      %v354 = vmul.f32 %v349, %v352
      %v355 = vadd.f32 %v334, %v354
      %356 = vset.pattern.permute.xlu0 15
      %357 = vperm.xlu0 %356, %v29
      %v358 = vpop.permute.xlu0 %357
      %v360 = vmul.f32 %v28, %v358
      %361 = vset.pattern.permute.xlu0 15
      %362 = vperm.xlu0 %361, %v30
      %v363 = vpop.permute.xlu0 %362
      %v365 = vadd.f32 %v360, %v363
      %v366 = vmul.f32 %v365, 0.5
      %v367 = vtanh.pop %v366
      %v368 = vadd.f32 %v367, 1.0
      %v369 = vmul.f32 %v368, 0.5
      %v370 = vmul.f32 %v365, %v369
      %371 = vset.pattern.permute.xlu0 15
      %372 = vperm.xlu0 %371, %v31
      %v373 = vpop.permute.xlu0 %372
      %v375 = vmul.f32 %v370, %v373
      %v376 = vadd.f32 %v355, %v375
      %377 = vst [vmem:[#allocation2] sm:$0xf] %v376
    $region29: #{tpu_custom_call.1} parent=1 // pred_fallthru
      _
    %v378 = vld [vmem:[%s5] sm:$0xff]
    %v379 = vld [vmem:[#allocation2] sm:$0xf]
    %vm380 = vcmask 31744
    %v382 = vsel %vm380, %v378, 0
    %vm384 = vcmask 1043456
    %v386 = vsel %vm384, %v379, 0
    %388 = vmatprep.subr.mxu0 0.0
    %389 = vmatpush1.msra.mxu0 %v386
    %390 = vmatprep.subr.mxu0 0.0
    %391 = vmatpush1.msra.mxu0 0.0
    %392 = vmatprep.subr.mxu0 0.0
    %393 = vmatpush1.msra.mxu0 0.0
    %394 = vmatprep.subr.mxu0 0.0
    %395 = vmatpush1.msra.mxu0 0.0
    %396 = vmatprep.subr.mxu0 0.0
    %397 = vmatpush1.msra.mxu0 0.0
    %398 = vmatprep.subr.mxu0 0.0
    %399 = vmatpush1.msra.mxu0 0.0
    %400 = vmatprep.subr.mxu0 0.0
    %401 = vmatpush1.msra.mxu0 0.0
    %402 = vmatprep.subr.mxu0 0.0
    %403 = vmatpush1.msra.mxu0 0.0
    %404 = vmatprep.subr.mxu0 0.0
    %405 = vmatpush1.msra.mxu0 0.0
    %406 = vmatprep.subr.mxu0 0.0
    %407 = vmatpush1.msra.mxu0 0.0
    %408 = vmatprep.subr.mxu0 0.0
    %409 = vmatpush1.msra.mxu0 0.0
    %410 = vmatprep.subr.mxu0 0.0
    %411 = vmatpush1.msra.mxu0 0.0
    %412 = vmatprep.subr.mxu0 0.0
    %413 = vmatpush1.msra.mxu0 0.0
    %414 = vmatprep.subr.mxu0 0.0
    %415 = vmatpush1.msra.mxu0 0.0
    %416 = vmatprep.subr.mxu0 0.0
    %417 = vmatpush1.msra.mxu0 0.0
    %418 = vmatprep.subr.mxu0 0.0
    %419 = vmatpush1.msra.mxu0 0.0
    %420 = vmatprep.subr.mxu0 0.0
    %421 = vmatpush1.msra.mxu0 0.0
    %422 = vmatprep.subr.mxu0 0.0
    %423 = vmatpush1.msra.mxu0 0.0
    %424 = vmatprep.subr.mxu0 0.0
    %425 = vmatpush1.msra.mxu0 0.0
    %426 = vmatprep.subr.mxu0 0.0
    %427 = vmatpush1.msra.mxu0 0.0
    %428 = vmatprep.subr.mxu0 0.0
    %429 = vmatpush1.msra.mxu0 0.0
    %430 = vmatprep.subr.mxu0 0.0
    %431 = vmatpush1.msra.mxu0 0.0
    %432 = vmatprep.subr.mxu0 0.0
    %433 = vmatpush1.msra.mxu0 0.0
    %434 = vmatprep.subr.mxu0 0.0
    %435 = vmatpush1.msra.mxu0 0.0
    %436 = vmatprep.subr.mxu0 0.0
    %437 = vmatpush1.msra.mxu0 0.0
    %438 = vmatprep.subr.mxu0 0.0
    %439 = vmatpush1.msra.mxu0 0.0
    %440 = vmatprep.subr.mxu0 0.0
    %441 = vmatpush1.msra.mxu0 0.0
    %442 = vmatprep.subr.mxu0 0.0
    %443 = vmatpush1.msra.mxu0 0.0
    %444 = vmatprep.subr.mxu0 0.0
    %445 = vmatpush1.msra.mxu0 0.0
    %446 = vmatprep.subr.mxu0 0.0
    %447 = vmatpush1.msra.mxu0 0.0
    %448 = vmatprep.subr.mxu0 0.0
    %449 = vmatpush1.msra.mxu0 0.0
    %450 = vmatprep.subr.mxu0 0.0
    %451 = vmatpush1.msra.mxu0 0.0
    %452 = vmatprep.mubr.f32.mxu0 0.0
    %453 = vmatmul.mubr.f32.gmra.mrb[0].mxu0 %v382
    %v454 = vpop.f32.mrb[0].mxu0
    %v455 = vadd.f32 0.0, %v454
    %v456 = vpop.f32.mrb[0].mxu0
    %457 = vdwg.mxu0
    %458 = vst [vmem:[#allocation3] sm:$0xff] %v455
    // Predicated region
    $region30: #{tpu_custom_call.1} parent=1 // pred_check
      _
    $region31: #{tpu_custom_call.1} parent=1 // pred_check_branch
      %460 = sbr.rel (0) target = $region33
    $region32: #{tpu_custom_call.1} parent=1 // pred_region
      %s462 = ssub.s32 128, 128
      %463 = vsyncadd [#allocation4], %s462
      %s465 = sshll.u32 [#allocation3], 4
      %s466 = int_to_ptr.vmem [resolvable:$true] %s465
      %468 = dma.vmem_to_hbm [thread:$0]  %s466, 128, %s6, [#allocation4]
    $region33: #{tpu_custom_call.1} parent=1 // pred_fallthru
      _
    // Predicated region
    $region34: #{tpu_custom_call.1} parent=1 // pred_check
      _
    $region35: #{tpu_custom_call.1} parent=1 // pred_check_branch
      %470 = sbr.rel (0) target = $region37
    $region36: #{tpu_custom_call.1} parent=1 // pred_region
      %471 = dma.done [#allocation4], 128
    $region37: #{tpu_custom_call.1} parent=1 // pred_fallthru
      _
    %472 = vsyncpa [#allocation4], 1

</llo_original>
